<compile_context>
chip_gen: v5e
topology: v5e:2x2
jax: 0.10.0
libtpu: 0.0.40
codegen_flags: <defaults>
</compile_context>

<pallas_src>
import jax
import jax.numpy as jnp
from jax.experimental import pallas as pl
from jax.experimental.pallas import tpu as pltpu

# ----------------------------- hyperparameters -----------------------------
B = 8            # batch
SRC_LEN = 8      # encoder sequence length
TGT_LEN = 8      # decoder (target) sequence length
EMB = 32         # embedding dim (both languages)
HID = 32         # encoder hidden dim (decoder hidden = 2*HID)
N_LAYERS = 1     # encoder.n_layers == decoder.n_layers
EN_VOCAB = 64
CN_VOCAB = 64
V_PAD = 128      # vocab logits padded to a full 128-lane vreg for dense stores
DEC_HID = 2 * HID
TEACHER_FORCING_RATIO = 1.0   # random.random() <= 1.0 always -> deterministic

_VMEM = pl.BlockSpec(memory_space=pltpu.MemorySpace.VMEM)


# ------------------------------ Pallas kernels ------------------------------
def enc_dir_kernel(emb_ref, wih_ref, whh_ref, bih_ref, bhh_ref, hfin_ref):
    """One encoder direction (grid axis d picks fwd / time-reversed inputs).

    emb_ref: (1, S*B, EMB) bf16  time-major, already reversed for the bwd dir
    wih_ref: (1, EMB, 3H) bf16, whh_ref: (1, H, 3H) bf16
    bih/bhh: (1, 1, 3H) f32
    hfin_ref: (1, B, H) f32  final hidden of this direction
    Gate order (r, z, n) matches torch.nn.GRU.
    """
    H = HID
    x = emb_ref[0]                                    # (S*B, EMB) bf16
    # Hoisted input projection: one (S*B, EMB)@(EMB, 3H) MXU matmul.
    gi = jnp.dot(x, wih_ref[0], preferred_element_type=jnp.float32) + bih_ref[0]
    whh = whh_ref[0]
    bhh = bhh_ref[0]
    h = jnp.zeros((B, H), jnp.float32)
    for t in range(SRC_LEN):                          # static unroll, S=8
        gh = jnp.dot(h.astype(jnp.bfloat16), whh,
                     preferred_element_type=jnp.float32) + bhh
        g = gi[t * B:(t + 1) * B]                     # sublane-aligned slice
        r = jax.nn.sigmoid(g[:, :H] + gh[:, :H])
        z = jax.nn.sigmoid(g[:, H:2 * H] + gh[:, H:2 * H])
        n = jnp.tanh(g[:, 2 * H:] + r * gh[:, 2 * H:])
        h = (1.0 - z) * n + z * h
    hfin_ref[0] = h


def dec_kernel(emb_ref, h0_ref, wih_ref, whh_ref, bih_ref, bhh_ref,
               w1_ref, b1_ref, w2_ref, b2_ref, w3_ref, b3_ref, out_ref):
    """Full decoder: (T-1)-step GRU recurrence + fused 3-layer vocab head.

    emb_ref: ((T-1)*B, EMB) bf16  teacher-forced inputs, time-major flattened
    h0_ref : (B, 2H) f32          initial hidden = cat(enc fwd/bwd finals)
    wih    : (EMB, 6H) bf16, whh: (2H, 6H) bf16, biases (1, 6H) f32
    head   : w1 (2H,4H) bf16, w2 (4H,8H) bf16, w3 (8H,V_PAD) bf16, biases f32
    out_ref: ((T-1)*B, V_PAD) f32 logits (lane-dense; pad sliced off in glue)
    """
    DH = DEC_HID
    T1 = TGT_LEN - 1
    # Hoisted input projection for every decoder step at once.
    gi = jnp.dot(emb_ref[...], wih_ref[...],
                 preferred_element_type=jnp.float32) + bih_ref[...]
    whh = whh_ref[...]
    bhh = bhh_ref[...]
    h = h0_ref[...]
    hs = []
    for t in range(T1):                               # static unroll, T-1=7
        gh = jnp.dot(h.astype(jnp.bfloat16), whh,
                     preferred_element_type=jnp.float32) + bhh
        g = gi[t * B:(t + 1) * B]
        r = jax.nn.sigmoid(g[:, :DH] + gh[:, :DH])
        z = jax.nn.sigmoid(g[:, DH:2 * DH] + gh[:, DH:2 * DH])
        n = jnp.tanh(g[:, 2 * DH:] + r * gh[:, 2 * DH:])
        h = (1.0 - z) * n + z * h
        hs.append(h)
    # Head applied once on all (T-1)*B hidden states (teacher forcing => the
    # head never feeds back into the recurrence).
    hcat = jnp.concatenate(hs, axis=0)                # ((T-1)*B, 2H) f32
    y = jnp.dot(hcat.astype(jnp.bfloat16), w1_ref[...],
                preferred_element_type=jnp.float32) + b1_ref[...]
    y = jnp.dot(y.astype(jnp.bfloat16), w2_ref[...],
                preferred_element_type=jnp.float32) + b2_ref[...]
    y = jnp.dot(y.astype(jnp.bfloat16), w3_ref[...],
                preferred_element_type=jnp.float32) + b3_ref[...]
    out_ref[...] = y


# ------------------------------ pallas wrappers ------------------------------
def encoder_pallas(emb_dirs, wih_s, whh_s, bih_s, bhh_s):
    """Fused bidirectional encoder.  Returns (2, B, HID) final hiddens."""
    dmap = lambda d: (d, 0, 0)
    return pl.pallas_call(
        enc_dir_kernel,
        out_shape=jax.ShapeDtypeStruct((2, B, HID), jnp.float32),
        grid=(2,),
        in_specs=[
            pl.BlockSpec((1, SRC_LEN * B, EMB), dmap),
            pl.BlockSpec((1, EMB, 3 * HID), dmap),
            pl.BlockSpec((1, HID, 3 * HID), dmap),
            pl.BlockSpec((1, 1, 3 * HID), dmap),
            pl.BlockSpec((1, 1, 3 * HID), dmap),
        ],
        out_specs=pl.BlockSpec((1, B, HID), dmap),
        compiler_params=pltpu.CompilerParams(
            dimension_semantics=("parallel",)),   # v7x: one direction per TC
    )(emb_dirs, wih_s, whh_s, bih_s, bhh_s)


def decoder_pallas(emb_flat, h0, wih, whh, bih, bhh, w1, b1, w2, b2, w3, b3):
    """Fused decoder (GRU recurrence + 3-layer head) in one launch."""
    TBrows = emb_flat.shape[0]
    return pl.pallas_call(
        dec_kernel,
        out_shape=jax.ShapeDtypeStruct((TBrows, V_PAD), jnp.float32),
        in_specs=[_VMEM] * 12,
        out_specs=_VMEM,
    )(emb_flat, h0, wih, whh, bih, bhh, w1, b1, w2, b2, w3, b3)


# ------------------------------- parameters --------------------------------
def _uniform(key, shape, scale):
    return jax.random.uniform(key, shape, jnp.float32, -scale, scale)


def _init_gru(key, d_in, h):
    k = jax.random.split(key, 4)
    s = 1.0 / (h ** 0.5)
    wih = _uniform(k[0], (d_in, 3 * h), s).astype(jnp.bfloat16)
    whh = _uniform(k[1], (h, 3 * h), s).astype(jnp.bfloat16)
    bih = _uniform(k[2], (1, 3 * h), s)
    bhh = _uniform(k[3], (1, 3 * h), s)
    return wih, whh, bih, bhh


def _init_linear(key, d_in, d_out, d_out_pad=None):
    k = jax.random.split(key, 2)
    s = 1.0 / (d_in ** 0.5)
    w = _uniform(k[0], (d_in, d_out), s)
    b = _uniform(k[1], (1, d_out), s)
    if d_out_pad is not None and d_out_pad > d_out:
        w = jnp.pad(w, ((0, 0), (0, d_out_pad - d_out)))
        b = jnp.pad(b, ((0, 0), (0, d_out_pad - d_out)))
    return w.astype(jnp.bfloat16), b


def init_params(key):
    ks = jax.random.split(key, 8)
    p = {
        "en_emb": (jax.random.normal(ks[0], (EN_VOCAB, EMB), jnp.float32)
                   * 0.1).astype(jnp.bfloat16),
        "cn_emb": (jax.random.normal(ks[1], (CN_VOCAB, EMB), jnp.float32)
                   * 0.1).astype(jnp.bfloat16),
    }
    # Encoder fwd/bwd GRUs stacked on a leading direction axis (size 2) so the
    # fused encoder kernel picks its direction via BlockSpec index_map.
    fwd = _init_gru(ks[2], EMB, HID)
    bwd = _init_gru(ks[3], EMB, HID)
    p["enc_gru"] = tuple(jnp.stack([f, b], axis=0) for f, b in zip(fwd, bwd))
    p["dec_gru"] = _init_gru(ks[4], EMB, DEC_HID)
    w1, b1 = _init_linear(ks[5], DEC_HID, DEC_HID * 2)
    w2, b2 = _init_linear(ks[6], DEC_HID * 2, DEC_HID * 4)
    w3, b3 = _init_linear(ks[7], DEC_HID * 4, CN_VOCAB, d_out_pad=V_PAD)
    p["dec_head"] = (w1, b1, w2, b2, w3, b3)
    return p


# ------------------------------ model forward -------------------------------
def seq2seq_forward(src_ids, tgt_ids, params, teacher_forcing_ratio):
    """Mirrors Seq2Seq.forward with teacher_forcing_ratio = 1.0."""
    # The batched decoder head requires fully deterministic teacher forcing.
    # TODO(synk): per-step stochastic teacher forcing (ratio < 1.0) would need
    # the head back inside the recurrence with a lax.cond/select on the input.
    assert teacher_forcing_ratio >= 1.0

    # ----- encoder (single fused pallas_call, both directions) -----
    emb = params["en_emb"][src_ids]                       # (B, S, EMB) gather glue
    emb_t = jnp.swapaxes(emb, 0, 1)                       # (S, B, EMB) time-major
    emb_fwd = emb_t.reshape(SRC_LEN * B, EMB)
    emb_bwd = emb_t[::-1].reshape(SRC_LEN * B, EMB)       # time-reversed for bwd dir
    emb_dirs = jnp.stack([emb_fwd, emb_bwd], axis=0)      # (2, S*B, EMB)
    hfin = encoder_pallas(emb_dirs, *params["enc_gru"])   # (2, B, HID)
    # hidden.view(n_layers, 2, B, H); cat(fwd_final, bwd_final) on features
    hidden0 = jnp.concatenate([hfin[0], hfin[1]], axis=1)  # (B, 2H)
    # encoder_outputs deliberately not materialized: unused by the decoder.

    # ----- decoder (single fused pallas_call) -----
    # Teacher-forced inputs for steps t=1..T-1 are target[:, 0..T-2].
    dec_emb = params["cn_emb"][tgt_ids[:, :TGT_LEN - 1]]  # (B, T-1, EMB)
    dec_emb = jnp.swapaxes(dec_emb, 0, 1).reshape((TGT_LEN - 1) * B, EMB)
    logits_pad = decoder_pallas(dec_emb, hidden0,
                                *params["dec_gru"], *params["dec_head"])
    logits = logits_pad[:, :CN_VOCAB].reshape(TGT_LEN - 1, B, CN_VOCAB)
    logits = jnp.swapaxes(logits, 0, 1)                   # (B, T-1, V)

    outputs = jnp.zeros((B, TGT_LEN, CN_VOCAB), jnp.float32)
    outputs = outputs.at[:, 1:].set(logits)               # outputs[:, 0] stays 0
    preds = jnp.argmax(logits, axis=-1).astype(jnp.int32)  # (B, T-1)
    return outputs, preds


# ----------------------------------- main ------------------------------------
if __name__ == "__main__":
    key = jax.random.PRNGKey(0)
    k_par, k_src, k_tgt = jax.random.split(key, 3)
    params = init_params(k_par)
    src = jax.random.randint(k_src, (B, SRC_LEN), 0, EN_VOCAB, dtype=jnp.int32)
    tgt = jax.random.randint(k_tgt, (B, TGT_LEN), 0, CN_VOCAB, dtype=jnp.int32)

    fwd = jax.jit(lambda s, t, p: seq2seq_forward(s, t, p, TEACHER_FORCING_RATIO))
    outputs, preds = fwd(src, tgt, params)
    jax.block_until_ready(outputs)
    jax.block_until_ready(preds)

    assert outputs.shape == (B, TGT_LEN, CN_VOCAB)
    assert preds.shape == (B, TGT_LEN - 1)
    assert bool(jnp.all(outputs[:, 0] == 0.0))  # outputs[:, 0] left zero, as in torch
    print("KERNEL_OK")
</pallas_src>

<mosaic_0001>
module attributes {stable_mosaic.version = 11 : i64} {
  func.func @enc_dir_kernel(%arg0: i32, %arg1: memref<1x64x32xbf16, #tpu.memory_space<vmem>>, %arg2: memref<1x32x96xbf16, #tpu.memory_space<vmem>>, %arg3: memref<1x32x96xbf16, #tpu.memory_space<vmem>>, %arg4: memref<1x1x96xf32, #tpu.memory_space<vmem>>, %arg5: memref<1x1x96xf32, #tpu.memory_space<vmem>>, %arg6: memref<1x8x32xf32, #tpu.memory_space<vmem>>) attributes {dimension_semantics = [#tpu.dimension_semantics<parallel>], iteration_bounds = array<i64: 2>, scalar_prefetch = 0 : i64, scratch_operands = 0 : i64, tpu.core_type = #tpu.core_type<tc>, window_params = [{transform_indices = @transform_0, window_bounds = array<i64: 1, 64, 32>}, {transform_indices = @transform_1, window_bounds = array<i64: 1, 32, 96>}, {transform_indices = @transform_2, window_bounds = array<i64: 1, 32, 96>}, {transform_indices = @transform_3, window_bounds = array<i64: 1, 1, 96>}, {transform_indices = @transform_4, window_bounds = array<i64: 1, 1, 96>}, {transform_indices = @transform_5, window_bounds = array<i64: 1, 8, 32>}]} {
    %c0 = arith.constant 0 : index
    %c0_0 = arith.constant 0 : index
    %c0_1 = arith.constant 0 : index
    %0 = vector.load %arg1[%c0, %c0_0, %c0_1] : memref<1x64x32xbf16, #tpu.memory_space<vmem>>, vector<1x64x32xbf16>
    %1 = vector.shape_cast %0 : vector<1x64x32xbf16> to vector<64x32xbf16>
    %c0_2 = arith.constant 0 : index
    %c0_3 = arith.constant 0 : index
    %c0_4 = arith.constant 0 : index
    %2 = vector.load %arg2[%c0_2, %c0_3, %c0_4] : memref<1x32x96xbf16, #tpu.memory_space<vmem>>, vector<1x32x96xbf16>
    %3 = vector.shape_cast %2 : vector<1x32x96xbf16> to vector<32x96xbf16>
    %cst = arith.constant dense<0.000000e+00> : vector<64x96xf32>
    %4 = tpu.matmul %1, %3, %cst {dimension_numbers = #tpu.dot_dimension_numbers<[1], [0], [0], [1], [0, 0, 1, 1], [], []>} : vector<64x32xbf16>, vector<32x96xbf16>, vector<64x96xf32> -> vector<64x96xf32>
    %c0_5 = arith.constant 0 : index
    %c0_6 = arith.constant 0 : index
    %c0_7 = arith.constant 0 : index
    %5 = vector.load %arg4[%c0_5, %c0_6, %c0_7] : memref<1x1x96xf32, #tpu.memory_space<vmem>>, vector<1x1x96xf32>
    %6 = vector.shape_cast %5 : vector<1x1x96xf32> to vector<1x96xf32>
    %7 = vector.broadcast %6 : vector<1x96xf32> to vector<64x96xf32>
    %8 = arith.addf %4, %7 : vector<64x96xf32>
    %c0_8 = arith.constant 0 : index
    %c0_9 = arith.constant 0 : index
    %c0_10 = arith.constant 0 : index
    %9 = vector.load %arg3[%c0_8, %c0_9, %c0_10] : memref<1x32x96xbf16, #tpu.memory_space<vmem>>, vector<1x32x96xbf16>
    %10 = vector.shape_cast %9 : vector<1x32x96xbf16> to vector<32x96xbf16>
    %c0_11 = arith.constant 0 : index
    %c0_12 = arith.constant 0 : index
    %c0_13 = arith.constant 0 : index
    %11 = vector.load %arg5[%c0_11, %c0_12, %c0_13] : memref<1x1x96xf32, #tpu.memory_space<vmem>>, vector<1x1x96xf32>
    %12 = vector.shape_cast %11 : vector<1x1x96xf32> to vector<1x96xf32>
    %cst_14 = arith.constant 0.000000e+00 : f32
    %13 = vector.broadcast %cst_14 : f32 to vector<8x32xf32>
    %14 = arith.truncf %13 : vector<8x32xf32> to vector<8x32xbf16>
    %cst_15 = arith.constant dense<0.000000e+00> : vector<8x96xf32>
    %15 = tpu.matmul %14, %10, %cst_15 {dimension_numbers = #tpu.dot_dimension_numbers<[1], [0], [0], [1], [0, 0, 1, 1], [], []>} : vector<8x32xbf16>, vector<32x96xbf16>, vector<8x96xf32> -> vector<8x96xf32>
    %16 = vector.broadcast %12 : vector<1x96xf32> to vector<8x96xf32>
    %17 = arith.addf %15, %16 : vector<8x96xf32>
    %18 = vector.extract_strided_slice %8 {offsets = [0, 0], sizes = [8, 96], strides = [1, 1]} : vector<64x96xf32> to vector<8x96xf32>
    %19 = vector.extract_strided_slice %18 {offsets = [0, 0], sizes = [8, 32], strides = [1, 1]} : vector<8x96xf32> to vector<8x32xf32>
    %20 = vector.extract_strided_slice %17 {offsets = [0, 0], sizes = [8, 32], strides = [1, 1]} : vector<8x96xf32> to vector<8x32xf32>
    %21 = arith.addf %19, %20 : vector<8x32xf32>
    %22 = arith.negf %21 : vector<8x32xf32>
    %23 = math.exp %22 : vector<8x32xf32>
    %cst_16 = arith.constant 1.000000e+00 : f32
    %24 = vector.broadcast %cst_16 : f32 to vector<8x32xf32>
    %25 = arith.addf %24, %23 : vector<8x32xf32>
    %26 = arith.divf %24, %25 : vector<8x32xf32>
    %27 = vector.extract_strided_slice %18 {offsets = [0, 32], sizes = [8, 32], strides = [1, 1]} : vector<8x96xf32> to vector<8x32xf32>
    %28 = vector.extract_strided_slice %17 {offsets = [0, 32], sizes = [8, 32], strides = [1, 1]} : vector<8x96xf32> to vector<8x32xf32>
    %29 = arith.addf %27, %28 : vector<8x32xf32>
    %30 = arith.negf %29 : vector<8x32xf32>
    %31 = math.exp %30 : vector<8x32xf32>
    %cst_17 = arith.constant 1.000000e+00 : f32
    %32 = vector.broadcast %cst_17 : f32 to vector<8x32xf32>
    %33 = arith.addf %32, %31 : vector<8x32xf32>
    %34 = arith.divf %32, %33 : vector<8x32xf32>
    %35 = vector.extract_strided_slice %18 {offsets = [0, 64], sizes = [8, 32], strides = [1, 1]} : vector<8x96xf32> to vector<8x32xf32>
    %36 = vector.extract_strided_slice %17 {offsets = [0, 64], sizes = [8, 32], strides = [1, 1]} : vector<8x96xf32> to vector<8x32xf32>
    %37 = arith.mulf %26, %36 : vector<8x32xf32>
    %38 = arith.addf %35, %37 : vector<8x32xf32>
    %39 = math.tanh %38 : vector<8x32xf32>
    %cst_18 = arith.constant 1.000000e+00 : f32
    %40 = vector.broadcast %cst_18 : f32 to vector<8x32xf32>
    %41 = arith.subf %40, %34 : vector<8x32xf32>
    %42 = arith.mulf %41, %39 : vector<8x32xf32>
    %43 = arith.mulf %34, %13 : vector<8x32xf32>
    %44 = arith.addf %42, %43 : vector<8x32xf32>
    %45 = arith.truncf %44 : vector<8x32xf32> to vector<8x32xbf16>
    %cst_19 = arith.constant dense<0.000000e+00> : vector<8x96xf32>
    %46 = tpu.matmul %45, %10, %cst_19 {dimension_numbers = #tpu.dot_dimension_numbers<[1], [0], [0], [1], [0, 0, 1, 1], [], []>} : vector<8x32xbf16>, vector<32x96xbf16>, vector<8x96xf32> -> vector<8x96xf32>
    %47 = vector.broadcast %12 : vector<1x96xf32> to vector<8x96xf32>
    %48 = arith.addf %46, %47 : vector<8x96xf32>
    %49 = vector.extract_strided_slice %8 {offsets = [8, 0], sizes = [8, 96], strides = [1, 1]} : vector<64x96xf32> to vector<8x96xf32>
    %50 = vector.extract_strided_slice %49 {offsets = [0, 0], sizes = [8, 32], strides = [1, 1]} : vector<8x96xf32> to vector<8x32xf32>
    %51 = vector.extract_strided_slice %48 {offsets = [0, 0], sizes = [8, 32], strides = [1, 1]} : vector<8x96xf32> to vector<8x32xf32>
    %52 = arith.addf %50, %51 : vector<8x32xf32>
    %53 = arith.negf %52 : vector<8x32xf32>
    %54 = math.exp %53 : vector<8x32xf32>
    %cst_20 = arith.constant 1.000000e+00 : f32
    %55 = vector.broadcast %cst_20 : f32 to vector<8x32xf32>
    %56 = arith.addf %55, %54 : vector<8x32xf32>
    %57 = arith.divf %55, %56 : vector<8x32xf32>
    %58 = vector.extract_strided_slice %49 {offsets = [0, 32], sizes = [8, 32], strides = [1, 1]} : vector<8x96xf32> to vector<8x32xf32>
    %59 = vector.extract_strided_slice %48 {offsets = [0, 32], sizes = [8, 32], strides = [1, 1]} : vector<8x96xf32> to vector<8x32xf32>
    %60 = arith.addf %58, %59 : vector<8x32xf32>
    %61 = arith.negf %60 : vector<8x32xf32>
    %62 = math.exp %61 : vector<8x32xf32>
    %cst_21 = arith.constant 1.000000e+00 : f32
    %63 = vector.broadcast %cst_21 : f32 to vector<8x32xf32>
    %64 = arith.addf %63, %62 : vector<8x32xf32>
    %65 = arith.divf %63, %64 : vector<8x32xf32>
    %66 = vector.extract_strided_slice %49 {offsets = [0, 64], sizes = [8, 32], strides = [1, 1]} : vector<8x96xf32> to vector<8x32xf32>
    %67 = vector.extract_strided_slice %48 {offsets = [0, 64], sizes = [8, 32], strides = [1, 1]} : vector<8x96xf32> to vector<8x32xf32>
    %68 = arith.mulf %57, %67 : vector<8x32xf32>
    %69 = arith.addf %66, %68 : vector<8x32xf32>
    %70 = math.tanh %69 : vector<8x32xf32>
    %cst_22 = arith.constant 1.000000e+00 : f32
    %71 = vector.broadcast %cst_22 : f32 to vector<8x32xf32>
    %72 = arith.subf %71, %65 : vector<8x32xf32>
    %73 = arith.mulf %72, %70 : vector<8x32xf32>
    %74 = arith.mulf %65, %44 : vector<8x32xf32>
    %75 = arith.addf %73, %74 : vector<8x32xf32>
    %76 = arith.truncf %75 : vector<8x32xf32> to vector<8x32xbf16>
    %cst_23 = arith.constant dense<0.000000e+00> : vector<8x96xf32>
    %77 = tpu.matmul %76, %10, %cst_23 {dimension_numbers = #tpu.dot_dimension_numbers<[1], [0], [0], [1], [0, 0, 1, 1], [], []>} : vector<8x32xbf16>, vector<32x96xbf16>, vector<8x96xf32> -> vector<8x96xf32>
    %78 = vector.broadcast %12 : vector<1x96xf32> to vector<8x96xf32>
    %79 = arith.addf %77, %78 : vector<8x96xf32>
    %80 = vector.extract_strided_slice %8 {offsets = [16, 0], sizes = [8, 96], strides = [1, 1]} : vector<64x96xf32> to vector<8x96xf32>
    %81 = vector.extract_strided_slice %80 {offsets = [0, 0], sizes = [8, 32], strides = [1, 1]} : vector<8x96xf32> to vector<8x32xf32>
    %82 = vector.extract_strided_slice %79 {offsets = [0, 0], sizes = [8, 32], strides = [1, 1]} : vector<8x96xf32> to vector<8x32xf32>
    %83 = arith.addf %81, %82 : vector<8x32xf32>
    %84 = arith.negf %83 : vector<8x32xf32>
    %85 = math.exp %84 : vector<8x32xf32>
    %cst_24 = arith.constant 1.000000e+00 : f32
    %86 = vector.broadcast %cst_24 : f32 to vector<8x32xf32>
    %87 = arith.addf %86, %85 : vector<8x32xf32>
    %88 = arith.divf %86, %87 : vector<8x32xf32>
    %89 = vector.extract_strided_slice %80 {offsets = [0, 32], sizes = [8, 32], strides = [1, 1]} : vector<8x96xf32> to vector<8x32xf32>
    %90 = vector.extract_strided_slice %79 {offsets = [0, 32], sizes = [8, 32], strides = [1, 1]} : vector<8x96xf32> to vector<8x32xf32>
    %91 = arith.addf %89, %90 : vector<8x32xf32>
    %92 = arith.negf %91 : vector<8x32xf32>
    %93 = math.exp %92 : vector<8x32xf32>
    %cst_25 = arith.constant 1.000000e+00 : f32
    %94 = vector.broadcast %cst_25 : f32 to vector<8x32xf32>
    %95 = arith.addf %94, %93 : vector<8x32xf32>
    %96 = arith.divf %94, %95 : vector<8x32xf32>
    %97 = vector.extract_strided_slice %80 {offsets = [0, 64], sizes = [8, 32], strides = [1, 1]} : vector<8x96xf32> to vector<8x32xf32>
    %98 = vector.extract_strided_slice %79 {offsets = [0, 64], sizes = [8, 32], strides = [1, 1]} : vector<8x96xf32> to vector<8x32xf32>
    %99 = arith.mulf %88, %98 : vector<8x32xf32>
    %100 = arith.addf %97, %99 : vector<8x32xf32>
    %101 = math.tanh %100 : vector<8x32xf32>
    %cst_26 = arith.constant 1.000000e+00 : f32
    %102 = vector.broadcast %cst_26 : f32 to vector<8x32xf32>
    %103 = arith.subf %102, %96 : vector<8x32xf32>
    %104 = arith.mulf %103, %101 : vector<8x32xf32>
    %105 = arith.mulf %96, %75 : vector<8x32xf32>
    %106 = arith.addf %104, %105 : vector<8x32xf32>
    %107 = arith.truncf %106 : vector<8x32xf32> to vector<8x32xbf16>
    %cst_27 = arith.constant dense<0.000000e+00> : vector<8x96xf32>
    %108 = tpu.matmul %107, %10, %cst_27 {dimension_numbers = #tpu.dot_dimension_numbers<[1], [0], [0], [1], [0, 0, 1, 1], [], []>} : vector<8x32xbf16>, vector<32x96xbf16>, vector<8x96xf32> -> vector<8x96xf32>
    %109 = vector.broadcast %12 : vector<1x96xf32> to vector<8x96xf32>
    %110 = arith.addf %108, %109 : vector<8x96xf32>
    %111 = vector.extract_strided_slice %8 {offsets = [24, 0], sizes = [8, 96], strides = [1, 1]} : vector<64x96xf32> to vector<8x96xf32>
    %112 = vector.extract_strided_slice %111 {offsets = [0, 0], sizes = [8, 32], strides = [1, 1]} : vector<8x96xf32> to vector<8x32xf32>
    %113 = vector.extract_strided_slice %110 {offsets = [0, 0], sizes = [8, 32], strides = [1, 1]} : vector<8x96xf32> to vector<8x32xf32>
    %114 = arith.addf %112, %113 : vector<8x32xf32>
    %115 = arith.negf %114 : vector<8x32xf32>
    %116 = math.exp %115 : vector<8x32xf32>
    %cst_28 = arith.constant 1.000000e+00 : f32
    %117 = vector.broadcast %cst_28 : f32 to vector<8x32xf32>
    %118 = arith.addf %117, %116 : vector<8x32xf32>
    %119 = arith.divf %117, %118 : vector<8x32xf32>
    %120 = vector.extract_strided_slice %111 {offsets = [0, 32], sizes = [8, 32], strides = [1, 1]} : vector<8x96xf32> to vector<8x32xf32>
    %121 = vector.extract_strided_slice %110 {offsets = [0, 32], sizes = [8, 32], strides = [1, 1]} : vector<8x96xf32> to vector<8x32xf32>
    %122 = arith.addf %120, %121 : vector<8x32xf32>
    %123 = arith.negf %122 : vector<8x32xf32>
    %124 = math.exp %123 : vector<8x32xf32>
    %cst_29 = arith.constant 1.000000e+00 : f32
    %125 = vector.broadcast %cst_29 : f32 to vector<8x32xf32>
    %126 = arith.addf %125, %124 : vector<8x32xf32>
    %127 = arith.divf %125, %126 : vector<8x32xf32>
    %128 = vector.extract_strided_slice %111 {offsets = [0, 64], sizes = [8, 32], strides = [1, 1]} : vector<8x96xf32> to vector<8x32xf32>
    %129 = vector.extract_strided_slice %110 {offsets = [0, 64], sizes = [8, 32], strides = [1, 1]} : vector<8x96xf32> to vector<8x32xf32>
    %130 = arith.mulf %119, %129 : vector<8x32xf32>
    %131 = arith.addf %128, %130 : vector<8x32xf32>
    %132 = math.tanh %131 : vector<8x32xf32>
    %cst_30 = arith.constant 1.000000e+00 : f32
    %133 = vector.broadcast %cst_30 : f32 to vector<8x32xf32>
    %134 = arith.subf %133, %127 : vector<8x32xf32>
    %135 = arith.mulf %134, %132 : vector<8x32xf32>
    %136 = arith.mulf %127, %106 : vector<8x32xf32>
    %137 = arith.addf %135, %136 : vector<8x32xf32>
    %138 = arith.truncf %137 : vector<8x32xf32> to vector<8x32xbf16>
    %cst_31 = arith.constant dense<0.000000e+00> : vector<8x96xf32>
    %139 = tpu.matmul %138, %10, %cst_31 {dimension_numbers = #tpu.dot_dimension_numbers<[1], [0], [0], [1], [0, 0, 1, 1], [], []>} : vector<8x32xbf16>, vector<32x96xbf16>, vector<8x96xf32> -> vector<8x96xf32>
    %140 = vector.broadcast %12 : vector<1x96xf32> to vector<8x96xf32>
    %141 = arith.addf %139, %140 : vector<8x96xf32>
    %142 = vector.extract_strided_slice %8 {offsets = [32, 0], sizes = [8, 96], strides = [1, 1]} : vector<64x96xf32> to vector<8x96xf32>
    %143 = vector.extract_strided_slice %142 {offsets = [0, 0], sizes = [8, 32], strides = [1, 1]} : vector<8x96xf32> to vector<8x32xf32>
    %144 = vector.extract_strided_slice %141 {offsets = [0, 0], sizes = [8, 32], strides = [1, 1]} : vector<8x96xf32> to vector<8x32xf32>
    %145 = arith.addf %143, %144 : vector<8x32xf32>
    %146 = arith.negf %145 : vector<8x32xf32>
    %147 = math.exp %146 : vector<8x32xf32>
    %cst_32 = arith.constant 1.000000e+00 : f32
    %148 = vector.broadcast %cst_32 : f32 to vector<8x32xf32>
    %149 = arith.addf %148, %147 : vector<8x32xf32>
    %150 = arith.divf %148, %149 : vector<8x32xf32>
    %151 = vector.extract_strided_slice %142 {offsets = [0, 32], sizes = [8, 32], strides = [1, 1]} : vector<8x96xf32> to vector<8x32xf32>
    %152 = vector.extract_strided_slice %141 {offsets = [0, 32], sizes = [8, 32], strides = [1, 1]} : vector<8x96xf32> to vector<8x32xf32>
    %153 = arith.addf %151, %152 : vector<8x32xf32>
    %154 = arith.negf %153 : vector<8x32xf32>
    %155 = math.exp %154 : vector<8x32xf32>
    %cst_33 = arith.constant 1.000000e+00 : f32
    %156 = vector.broadcast %cst_33 : f32 to vector<8x32xf32>
    %157 = arith.addf %156, %155 : vector<8x32xf32>
    %158 = arith.divf %156, %157 : vector<8x32xf32>
    %159 = vector.extract_strided_slice %142 {offsets = [0, 64], sizes = [8, 32], strides = [1, 1]} : vector<8x96xf32> to vector<8x32xf32>
    %160 = vector.extract_strided_slice %141 {offsets = [0, 64], sizes = [8, 32], strides = [1, 1]} : vector<8x96xf32> to vector<8x32xf32>
    %161 = arith.mulf %150, %160 : vector<8x32xf32>
    %162 = arith.addf %159, %161 : vector<8x32xf32>
    %163 = math.tanh %162 : vector<8x32xf32>
    %cst_34 = arith.constant 1.000000e+00 : f32
    %164 = vector.broadcast %cst_34 : f32 to vector<8x32xf32>
    %165 = arith.subf %164, %158 : vector<8x32xf32>
    %166 = arith.mulf %165, %163 : vector<8x32xf32>
    %167 = arith.mulf %158, %137 : vector<8x32xf32>
    %168 = arith.addf %166, %167 : vector<8x32xf32>
    %169 = arith.truncf %168 : vector<8x32xf32> to vector<8x32xbf16>
    %cst_35 = arith.constant dense<0.000000e+00> : vector<8x96xf32>
    %170 = tpu.matmul %169, %10, %cst_35 {dimension_numbers = #tpu.dot_dimension_numbers<[1], [0], [0], [1], [0, 0, 1, 1], [], []>} : vector<8x32xbf16>, vector<32x96xbf16>, vector<8x96xf32> -> vector<8x96xf32>
    %171 = vector.broadcast %12 : vector<1x96xf32> to vector<8x96xf32>
    %172 = arith.addf %170, %171 : vector<8x96xf32>
    %173 = vector.extract_strided_slice %8 {offsets = [40, 0], sizes = [8, 96], strides = [1, 1]} : vector<64x96xf32> to vector<8x96xf32>
    %174 = vector.extract_strided_slice %173 {offsets = [0, 0], sizes = [8, 32], strides = [1, 1]} : vector<8x96xf32> to vector<8x32xf32>
    %175 = vector.extract_strided_slice %172 {offsets = [0, 0], sizes = [8, 32], strides = [1, 1]} : vector<8x96xf32> to vector<8x32xf32>
    %176 = arith.addf %174, %175 : vector<8x32xf32>
    %177 = arith.negf %176 : vector<8x32xf32>
    %178 = math.exp %177 : vector<8x32xf32>
    %cst_36 = arith.constant 1.000000e+00 : f32
    %179 = vector.broadcast %cst_36 : f32 to vector<8x32xf32>
    %180 = arith.addf %179, %178 : vector<8x32xf32>
    %181 = arith.divf %179, %180 : vector<8x32xf32>
    %182 = vector.extract_strided_slice %173 {offsets = [0, 32], sizes = [8, 32], strides = [1, 1]} : vector<8x96xf32> to vector<8x32xf32>
    %183 = vector.extract_strided_slice %172 {offsets = [0, 32], sizes = [8, 32], strides = [1, 1]} : vector<8x96xf32> to vector<8x32xf32>
    %184 = arith.addf %182, %183 : vector<8x32xf32>
    %185 = arith.negf %184 : vector<8x32xf32>
    %186 = math.exp %185 : vector<8x32xf32>
    %cst_37 = arith.constant 1.000000e+00 : f32
    %187 = vector.broadcast %cst_37 : f32 to vector<8x32xf32>
    %188 = arith.addf %187, %186 : vector<8x32xf32>
    %189 = arith.divf %187, %188 : vector<8x32xf32>
    %190 = vector.extract_strided_slice %173 {offsets = [0, 64], sizes = [8, 32], strides = [1, 1]} : vector<8x96xf32> to vector<8x32xf32>
    %191 = vector.extract_strided_slice %172 {offsets = [0, 64], sizes = [8, 32], strides = [1, 1]} : vector<8x96xf32> to vector<8x32xf32>
    %192 = arith.mulf %181, %191 : vector<8x32xf32>
    %193 = arith.addf %190, %192 : vector<8x32xf32>
    %194 = math.tanh %193 : vector<8x32xf32>
    %cst_38 = arith.constant 1.000000e+00 : f32
    %195 = vector.broadcast %cst_38 : f32 to vector<8x32xf32>
    %196 = arith.subf %195, %189 : vector<8x32xf32>
    %197 = arith.mulf %196, %194 : vector<8x32xf32>
    %198 = arith.mulf %189, %168 : vector<8x32xf32>
    %199 = arith.addf %197, %198 : vector<8x32xf32>
    %200 = arith.truncf %199 : vector<8x32xf32> to vector<8x32xbf16>
    %cst_39 = arith.constant dense<0.000000e+00> : vector<8x96xf32>
    %201 = tpu.matmul %200, %10, %cst_39 {dimension_numbers = #tpu.dot_dimension_numbers<[1], [0], [0], [1], [0, 0, 1, 1], [], []>} : vector<8x32xbf16>, vector<32x96xbf16>, vector<8x96xf32> -> vector<8x96xf32>
    %202 = vector.broadcast %12 : vector<1x96xf32> to vector<8x96xf32>
    %203 = arith.addf %201, %202 : vector<8x96xf32>
    %204 = vector.extract_strided_slice %8 {offsets = [48, 0], sizes = [8, 96], strides = [1, 1]} : vector<64x96xf32> to vector<8x96xf32>
    %205 = vector.extract_strided_slice %204 {offsets = [0, 0], sizes = [8, 32], strides = [1, 1]} : vector<8x96xf32> to vector<8x32xf32>
    %206 = vector.extract_strided_slice %203 {offsets = [0, 0], sizes = [8, 32], strides = [1, 1]} : vector<8x96xf32> to vector<8x32xf32>
    %207 = arith.addf %205, %206 : vector<8x32xf32>
    %208 = arith.negf %207 : vector<8x32xf32>
    %209 = math.exp %208 : vector<8x32xf32>
    %cst_40 = arith.constant 1.000000e+00 : f32
    %210 = vector.broadcast %cst_40 : f32 to vector<8x32xf32>
    %211 = arith.addf %210, %209 : vector<8x32xf32>
    %212 = arith.divf %210, %211 : vector<8x32xf32>
    %213 = vector.extract_strided_slice %204 {offsets = [0, 32], sizes = [8, 32], strides = [1, 1]} : vector<8x96xf32> to vector<8x32xf32>
    %214 = vector.extract_strided_slice %203 {offsets = [0, 32], sizes = [8, 32], strides = [1, 1]} : vector<8x96xf32> to vector<8x32xf32>
    %215 = arith.addf %213, %214 : vector<8x32xf32>
    %216 = arith.negf %215 : vector<8x32xf32>
    %217 = math.exp %216 : vector<8x32xf32>
    %cst_41 = arith.constant 1.000000e+00 : f32
    %218 = vector.broadcast %cst_41 : f32 to vector<8x32xf32>
    %219 = arith.addf %218, %217 : vector<8x32xf32>
    %220 = arith.divf %218, %219 : vector<8x32xf32>
    %221 = vector.extract_strided_slice %204 {offsets = [0, 64], sizes = [8, 32], strides = [1, 1]} : vector<8x96xf32> to vector<8x32xf32>
    %222 = vector.extract_strided_slice %203 {offsets = [0, 64], sizes = [8, 32], strides = [1, 1]} : vector<8x96xf32> to vector<8x32xf32>
    %223 = arith.mulf %212, %222 : vector<8x32xf32>
    %224 = arith.addf %221, %223 : vector<8x32xf32>
    %225 = math.tanh %224 : vector<8x32xf32>
    %cst_42 = arith.constant 1.000000e+00 : f32
    %226 = vector.broadcast %cst_42 : f32 to vector<8x32xf32>
    %227 = arith.subf %226, %220 : vector<8x32xf32>
    %228 = arith.mulf %227, %225 : vector<8x32xf32>
    %229 = arith.mulf %220, %199 : vector<8x32xf32>
    %230 = arith.addf %228, %229 : vector<8x32xf32>
    %231 = arith.truncf %230 : vector<8x32xf32> to vector<8x32xbf16>
    %cst_43 = arith.constant dense<0.000000e+00> : vector<8x96xf32>
    %232 = tpu.matmul %231, %10, %cst_43 {dimension_numbers = #tpu.dot_dimension_numbers<[1], [0], [0], [1], [0, 0, 1, 1], [], []>} : vector<8x32xbf16>, vector<32x96xbf16>, vector<8x96xf32> -> vector<8x96xf32>
    %233 = vector.broadcast %12 : vector<1x96xf32> to vector<8x96xf32>
    %234 = arith.addf %232, %233 : vector<8x96xf32>
    %235 = vector.extract_strided_slice %8 {offsets = [56, 0], sizes = [8, 96], strides = [1, 1]} : vector<64x96xf32> to vector<8x96xf32>
    %236 = vector.extract_strided_slice %235 {offsets = [0, 0], sizes = [8, 32], strides = [1, 1]} : vector<8x96xf32> to vector<8x32xf32>
    %237 = vector.extract_strided_slice %234 {offsets = [0, 0], sizes = [8, 32], strides = [1, 1]} : vector<8x96xf32> to vector<8x32xf32>
    %238 = arith.addf %236, %237 : vector<8x32xf32>
    %239 = arith.negf %238 : vector<8x32xf32>
    %240 = math.exp %239 : vector<8x32xf32>
    %cst_44 = arith.constant 1.000000e+00 : f32
    %241 = vector.broadcast %cst_44 : f32 to vector<8x32xf32>
    %242 = arith.addf %241, %240 : vector<8x32xf32>
    %243 = arith.divf %241, %242 : vector<8x32xf32>
    %244 = vector.extract_strided_slice %235 {offsets = [0, 32], sizes = [8, 32], strides = [1, 1]} : vector<8x96xf32> to vector<8x32xf32>
    %245 = vector.extract_strided_slice %234 {offsets = [0, 32], sizes = [8, 32], strides = [1, 1]} : vector<8x96xf32> to vector<8x32xf32>
    %246 = arith.addf %244, %245 : vector<8x32xf32>
    %247 = arith.negf %246 : vector<8x32xf32>
    %248 = math.exp %247 : vector<8x32xf32>
    %cst_45 = arith.constant 1.000000e+00 : f32
    %249 = vector.broadcast %cst_45 : f32 to vector<8x32xf32>
    %250 = arith.addf %249, %248 : vector<8x32xf32>
    %251 = arith.divf %249, %250 : vector<8x32xf32>
    %252 = vector.extract_strided_slice %235 {offsets = [0, 64], sizes = [8, 32], strides = [1, 1]} : vector<8x96xf32> to vector<8x32xf32>
    %253 = vector.extract_strided_slice %234 {offsets = [0, 64], sizes = [8, 32], strides = [1, 1]} : vector<8x96xf32> to vector<8x32xf32>
    %254 = arith.mulf %243, %253 : vector<8x32xf32>
    %255 = arith.addf %252, %254 : vector<8x32xf32>
    %256 = math.tanh %255 : vector<8x32xf32>
    %cst_46 = arith.constant 1.000000e+00 : f32
    %257 = vector.broadcast %cst_46 : f32 to vector<8x32xf32>
    %258 = arith.subf %257, %251 : vector<8x32xf32>
    %259 = arith.mulf %258, %256 : vector<8x32xf32>
    %260 = arith.mulf %251, %230 : vector<8x32xf32>
    %261 = arith.addf %259, %260 : vector<8x32xf32>
    %c0_47 = arith.constant 0 : index
    %c0_48 = arith.constant 0 : index
    %c0_49 = arith.constant 0 : index
    %262 = vector.load %arg6[%c0_47, %c0_48, %c0_49] : memref<1x8x32xf32, #tpu.memory_space<vmem>>, vector<1x8x32xf32>
    %263 = vector.shape_cast %262 : vector<1x8x32xf32> to vector<8x32xf32>
    %264 = vector.shape_cast %261 : vector<8x32xf32> to vector<1x8x32xf32>
    tpu.vector_store %arg6[%c0_47, %c0_48, %c0_49], %264 {strides = array<i32>} : memref<1x8x32xf32, #tpu.memory_space<vmem>>, vector<1x8x32xf32>,
    return
  }
  func.func @transform_0(%arg0: i32) -> (i32, i32, i32) {
    %c0_i32 = arith.constant 0 : i32
    %c0_i32_0 = arith.constant 0 : i32
    %c0_i32_1 = arith.constant 0 : i32
    return %arg0, %c0_i32, %c0_i32_0 : i32, i32, i32
  }
  func.func @transform_1(%arg0: i32) -> (i32, i32, i32) {
    %c0_i32 = arith.constant 0 : i32
    %c0_i32_0 = arith.constant 0 : i32
    %c0_i32_1 = arith.constant 0 : i32
    return %arg0, %c0_i32, %c0_i32_0 : i32, i32, i32
  }
  func.func @transform_2(%arg0: i32) -> (i32, i32, i32) {
    %c0_i32 = arith.constant 0 : i32
    %c0_i32_0 = arith.constant 0 : i32
    %c0_i32_1 = arith.constant 0 : i32
    return %arg0, %c0_i32, %c0_i32_0 : i32, i32, i32
  }
  func.func @transform_3(%arg0: i32) -> (i32, i32, i32) {
    %c0_i32 = arith.constant 0 : i32
    %c0_i32_0 = arith.constant 0 : i32
    %c0_i32_1 = arith.constant 0 : i32
    return %arg0, %c0_i32, %c0_i32_0 : i32, i32, i32
  }
  func.func @transform_4(%arg0: i32) -> (i32, i32, i32) {
    %c0_i32 = arith.constant 0 : i32
    %c0_i32_0 = arith.constant 0 : i32
    %c0_i32_1 = arith.constant 0 : i32
    return %arg0, %c0_i32, %c0_i32_0 : i32, i32, i32
  }
  func.func @transform_5(%arg0: i32) -> (i32, i32, i32) {
    %c0_i32 = arith.constant 0 : i32
    %c0_i32_0 = arith.constant 0 : i32
    %c0_i32_1 = arith.constant 0 : i32
    return %arg0, %c0_i32, %c0_i32_0 : i32, i32, i32
  }
}

module attributes {stable_mosaic.version = 11 : i64} {
  func.func @dec_kernel(%arg0: memref<56x32xbf16, #tpu.memory_space<vmem>>, %arg1: memref<8x64xf32, #tpu.memory_space<vmem>>, %arg2: memref<32x192xbf16, #tpu.memory_space<vmem>>, %arg3: memref<64x192xbf16, #tpu.memory_space<vmem>>, %arg4: memref<1x192xf32, #tpu.memory_space<vmem>>, %arg5: memref<1x192xf32, #tpu.memory_space<vmem>>, %arg6: memref<64x128xbf16, #tpu.memory_space<vmem>>, %arg7: memref<1x128xf32, #tpu.memory_space<vmem>>, %arg8: memref<128x256xbf16, #tpu.memory_space<vmem>>, %arg9: memref<1x256xf32, #tpu.memory_space<vmem>>, %arg10: memref<256x128xbf16, #tpu.memory_space<vmem>>, %arg11: memref<1x128xf32, #tpu.memory_space<vmem>>, %arg12: memref<56x128xf32, #tpu.memory_space<vmem>>) attributes {dimension_semantics = [], scalar_prefetch = 0 : i64, scratch_operands = 0 : i64, tpu.core_type = #tpu.core_type<tc>} {
    %c0 = arith.constant 0 : index
    %c0_0 = arith.constant 0 : index
    %0 = vector.load %arg0[%c0, %c0_0] : memref<56x32xbf16, #tpu.memory_space<vmem>>, vector<56x32xbf16>
    %c0_1 = arith.constant 0 : index
    %c0_2 = arith.constant 0 : index
    %1 = vector.load %arg2[%c0_1, %c0_2] : memref<32x192xbf16, #tpu.memory_space<vmem>>, vector<32x192xbf16>
    %cst = arith.constant dense<0.000000e+00> : vector<56x192xf32>
    %2 = tpu.matmul %0, %1, %cst {dimension_numbers = #tpu.dot_dimension_numbers<[1], [0], [0], [1], [0, 0, 1, 1], [], []>} : vector<56x32xbf16>, vector<32x192xbf16>, vector<56x192xf32> -> vector<56x192xf32>
    %c0_3 = arith.constant 0 : index
    %c0_4 = arith.constant 0 : index
    %3 = vector.load %arg4[%c0_3, %c0_4] : memref<1x192xf32, #tpu.memory_space<vmem>>, vector<1x192xf32>
    %4 = vector.broadcast %3 : vector<1x192xf32> to vector<56x192xf32>
    %5 = arith.addf %2, %4 : vector<56x192xf32>
    %c0_5 = arith.constant 0 : index
    %c0_6 = arith.constant 0 : index
    %6 = vector.load %arg3[%c0_5, %c0_6] : memref<64x192xbf16, #tpu.memory_space<vmem>>, vector<64x192xbf16>
    %c0_7 = arith.constant 0 : index
    %c0_8 = arith.constant 0 : index
    %7 = vector.load %arg5[%c0_7, %c0_8] : memref<1x192xf32, #tpu.memory_space<vmem>>, vector<1x192xf32>
    %c0_9 = arith.constant 0 : index
    %c0_10 = arith.constant 0 : index
    %8 = vector.load %arg1[%c0_9, %c0_10] : memref<8x64xf32, #tpu.memory_space<vmem>>, vector<8x64xf32>
    %9 = arith.truncf %8 : vector<8x64xf32> to vector<8x64xbf16>
    %cst_11 = arith.constant dense<0.000000e+00> : vector<8x192xf32>
    %10 = tpu.matmul %9, %6, %cst_11 {dimension_numbers = #tpu.dot_dimension_numbers<[1], [0], [0], [1], [0, 0, 1, 1], [], []>} : vector<8x64xbf16>, vector<64x192xbf16>, vector<8x192xf32> -> vector<8x192xf32>
    %11 = vector.broadcast %7 : vector<1x192xf32> to vector<8x192xf32>
    %12 = arith.addf %10, %11 : vector<8x192xf32>
    %13 = vector.extract_strided_slice %5 {offsets = [0, 0], sizes = [8, 192], strides = [1, 1]} : vector<56x192xf32> to vector<8x192xf32>
    %14 = vector.extract_strided_slice %13 {offsets = [0, 0], sizes = [8, 64], strides = [1, 1]} : vector<8x192xf32> to vector<8x64xf32>
    %15 = vector.extract_strided_slice %12 {offsets = [0, 0], sizes = [8, 64], strides = [1, 1]} : vector<8x192xf32> to vector<8x64xf32>
    %16 = arith.addf %14, %15 : vector<8x64xf32>
    %17 = arith.negf %16 : vector<8x64xf32>
    %18 = math.exp %17 : vector<8x64xf32>
    %cst_12 = arith.constant 1.000000e+00 : f32
    %19 = vector.broadcast %cst_12 : f32 to vector<8x64xf32>
    %20 = arith.addf %19, %18 : vector<8x64xf32>
    %21 = arith.divf %19, %20 : vector<8x64xf32>
    %22 = vector.extract_strided_slice %13 {offsets = [0, 64], sizes = [8, 64], strides = [1, 1]} : vector<8x192xf32> to vector<8x64xf32>
    %23 = vector.extract_strided_slice %12 {offsets = [0, 64], sizes = [8, 64], strides = [1, 1]} : vector<8x192xf32> to vector<8x64xf32>
    %24 = arith.addf %22, %23 : vector<8x64xf32>
    %25 = arith.negf %24 : vector<8x64xf32>
    %26 = math.exp %25 : vector<8x64xf32>
    %cst_13 = arith.constant 1.000000e+00 : f32
    %27 = vector.broadcast %cst_13 : f32 to vector<8x64xf32>
    %28 = arith.addf %27, %26 : vector<8x64xf32>
    %29 = arith.divf %27, %28 : vector<8x64xf32>
    %30 = vector.extract_strided_slice %13 {offsets = [0, 128], sizes = [8, 64], strides = [1, 1]} : vector<8x192xf32> to vector<8x64xf32>
    %31 = vector.extract_strided_slice %12 {offsets = [0, 128], sizes = [8, 64], strides = [1, 1]} : vector<8x192xf32> to vector<8x64xf32>
    %32 = arith.mulf %21, %31 : vector<8x64xf32>
    %33 = arith.addf %30, %32 : vector<8x64xf32>
    %34 = math.tanh %33 : vector<8x64xf32>
    %cst_14 = arith.constant 1.000000e+00 : f32
    %35 = vector.broadcast %cst_14 : f32 to vector<8x64xf32>
    %36 = arith.subf %35, %29 : vector<8x64xf32>
    %37 = arith.mulf %36, %34 : vector<8x64xf32>
    %38 = arith.mulf %29, %8 : vector<8x64xf32>
    %39 = arith.addf %37, %38 : vector<8x64xf32>
    %40 = arith.truncf %39 : vector<8x64xf32> to vector<8x64xbf16>
    %cst_15 = arith.constant dense<0.000000e+00> : vector<8x192xf32>
    %41 = tpu.matmul %40, %6, %cst_15 {dimension_numbers = #tpu.dot_dimension_numbers<[1], [0], [0], [1], [0, 0, 1, 1], [], []>} : vector<8x64xbf16>, vector<64x192xbf16>, vector<8x192xf32> -> vector<8x192xf32>
    %42 = vector.broadcast %7 : vector<1x192xf32> to vector<8x192xf32>
    %43 = arith.addf %41, %42 : vector<8x192xf32>
    %44 = vector.extract_strided_slice %5 {offsets = [8, 0], sizes = [8, 192], strides = [1, 1]} : vector<56x192xf32> to vector<8x192xf32>
    %45 = vector.extract_strided_slice %44 {offsets = [0, 0], sizes = [8, 64], strides = [1, 1]} : vector<8x192xf32> to vector<8x64xf32>
    %46 = vector.extract_strided_slice %43 {offsets = [0, 0], sizes = [8, 64], strides = [1, 1]} : vector<8x192xf32> to vector<8x64xf32>
    %47 = arith.addf %45, %46 : vector<8x64xf32>
    %48 = arith.negf %47 : vector<8x64xf32>
    %49 = math.exp %48 : vector<8x64xf32>
    %cst_16 = arith.constant 1.000000e+00 : f32
    %50 = vector.broadcast %cst_16 : f32 to vector<8x64xf32>
    %51 = arith.addf %50, %49 : vector<8x64xf32>
    %52 = arith.divf %50, %51 : vector<8x64xf32>
    %53 = vector.extract_strided_slice %44 {offsets = [0, 64], sizes = [8, 64], strides = [1, 1]} : vector<8x192xf32> to vector<8x64xf32>
    %54 = vector.extract_strided_slice %43 {offsets = [0, 64], sizes = [8, 64], strides = [1, 1]} : vector<8x192xf32> to vector<8x64xf32>
    %55 = arith.addf %53, %54 : vector<8x64xf32>
    %56 = arith.negf %55 : vector<8x64xf32>
    %57 = math.exp %56 : vector<8x64xf32>
    %cst_17 = arith.constant 1.000000e+00 : f32
    %58 = vector.broadcast %cst_17 : f32 to vector<8x64xf32>
    %59 = arith.addf %58, %57 : vector<8x64xf32>
    %60 = arith.divf %58, %59 : vector<8x64xf32>
    %61 = vector.extract_strided_slice %44 {offsets = [0, 128], sizes = [8, 64], strides = [1, 1]} : vector<8x192xf32> to vector<8x64xf32>
    %62 = vector.extract_strided_slice %43 {offsets = [0, 128], sizes = [8, 64], strides = [1, 1]} : vector<8x192xf32> to vector<8x64xf32>
    %63 = arith.mulf %52, %62 : vector<8x64xf32>
    %64 = arith.addf %61, %63 : vector<8x64xf32>
    %65 = math.tanh %64 : vector<8x64xf32>
    %cst_18 = arith.constant 1.000000e+00 : f32
    %66 = vector.broadcast %cst_18 : f32 to vector<8x64xf32>
    %67 = arith.subf %66, %60 : vector<8x64xf32>
    %68 = arith.mulf %67, %65 : vector<8x64xf32>
    %69 = arith.mulf %60, %39 : vector<8x64xf32>
    %70 = arith.addf %68, %69 : vector<8x64xf32>
    %71 = arith.truncf %70 : vector<8x64xf32> to vector<8x64xbf16>
    %cst_19 = arith.constant dense<0.000000e+00> : vector<8x192xf32>
    %72 = tpu.matmul %71, %6, %cst_19 {dimension_numbers = #tpu.dot_dimension_numbers<[1], [0], [0], [1], [0, 0, 1, 1], [], []>} : vector<8x64xbf16>, vector<64x192xbf16>, vector<8x192xf32> -> vector<8x192xf32>
    %73 = vector.broadcast %7 : vector<1x192xf32> to vector<8x192xf32>
    %74 = arith.addf %72, %73 : vector<8x192xf32>
    %75 = vector.extract_strided_slice %5 {offsets = [16, 0], sizes = [8, 192], strides = [1, 1]} : vector<56x192xf32> to vector<8x192xf32>
    %76 = vector.extract_strided_slice %75 {offsets = [0, 0], sizes = [8, 64], strides = [1, 1]} : vector<8x192xf32> to vector<8x64xf32>
    %77 = vector.extract_strided_slice %74 {offsets = [0, 0], sizes = [8, 64], strides = [1, 1]} : vector<8x192xf32> to vector<8x64xf32>
    %78 = arith.addf %76, %77 : vector<8x64xf32>
    %79 = arith.negf %78 : vector<8x64xf32>
    %80 = math.exp %79 : vector<8x64xf32>
    %cst_20 = arith.constant 1.000000e+00 : f32
    %81 = vector.broadcast %cst_20 : f32 to vector<8x64xf32>
    %82 = arith.addf %81, %80 : vector<8x64xf32>
    %83 = arith.divf %81, %82 : vector<8x64xf32>
    %84 = vector.extract_strided_slice %75 {offsets = [0, 64], sizes = [8, 64], strides = [1, 1]} : vector<8x192xf32> to vector<8x64xf32>
    %85 = vector.extract_strided_slice %74 {offsets = [0, 64], sizes = [8, 64], strides = [1, 1]} : vector<8x192xf32> to vector<8x64xf32>
    %86 = arith.addf %84, %85 : vector<8x64xf32>
    %87 = arith.negf %86 : vector<8x64xf32>
    %88 = math.exp %87 : vector<8x64xf32>
    %cst_21 = arith.constant 1.000000e+00 : f32
    %89 = vector.broadcast %cst_21 : f32 to vector<8x64xf32>
    %90 = arith.addf %89, %88 : vector<8x64xf32>
    %91 = arith.divf %89, %90 : vector<8x64xf32>
    %92 = vector.extract_strided_slice %75 {offsets = [0, 128], sizes = [8, 64], strides = [1, 1]} : vector<8x192xf32> to vector<8x64xf32>
    %93 = vector.extract_strided_slice %74 {offsets = [0, 128], sizes = [8, 64], strides = [1, 1]} : vector<8x192xf32> to vector<8x64xf32>
    %94 = arith.mulf %83, %93 : vector<8x64xf32>
    %95 = arith.addf %92, %94 : vector<8x64xf32>
    %96 = math.tanh %95 : vector<8x64xf32>
    %cst_22 = arith.constant 1.000000e+00 : f32
    %97 = vector.broadcast %cst_22 : f32 to vector<8x64xf32>
    %98 = arith.subf %97, %91 : vector<8x64xf32>
    %99 = arith.mulf %98, %96 : vector<8x64xf32>
    %100 = arith.mulf %91, %70 : vector<8x64xf32>
    %101 = arith.addf %99, %100 : vector<8x64xf32>
    %102 = arith.truncf %101 : vector<8x64xf32> to vector<8x64xbf16>
    %cst_23 = arith.constant dense<0.000000e+00> : vector<8x192xf32>
    %103 = tpu.matmul %102, %6, %cst_23 {dimension_numbers = #tpu.dot_dimension_numbers<[1], [0], [0], [1], [0, 0, 1, 1], [], []>} : vector<8x64xbf16>, vector<64x192xbf16>, vector<8x192xf32> -> vector<8x192xf32>
    %104 = vector.broadcast %7 : vector<1x192xf32> to vector<8x192xf32>
    %105 = arith.addf %103, %104 : vector<8x192xf32>
    %106 = vector.extract_strided_slice %5 {offsets = [24, 0], sizes = [8, 192], strides = [1, 1]} : vector<56x192xf32> to vector<8x192xf32>
    %107 = vector.extract_strided_slice %106 {offsets = [0, 0], sizes = [8, 64], strides = [1, 1]} : vector<8x192xf32> to vector<8x64xf32>
    %108 = vector.extract_strided_slice %105 {offsets = [0, 0], sizes = [8, 64], strides = [1, 1]} : vector<8x192xf32> to vector<8x64xf32>
    %109 = arith.addf %107, %108 : vector<8x64xf32>
    %110 = arith.negf %109 : vector<8x64xf32>
    %111 = math.exp %110 : vector<8x64xf32>
    %cst_24 = arith.constant 1.000000e+00 : f32
    %112 = vector.broadcast %cst_24 : f32 to vector<8x64xf32>
    %113 = arith.addf %112, %111 : vector<8x64xf32>
    %114 = arith.divf %112, %113 : vector<8x64xf32>
    %115 = vector.extract_strided_slice %106 {offsets = [0, 64], sizes = [8, 64], strides = [1, 1]} : vector<8x192xf32> to vector<8x64xf32>
    %116 = vector.extract_strided_slice %105 {offsets = [0, 64], sizes = [8, 64], strides = [1, 1]} : vector<8x192xf32> to vector<8x64xf32>
    %117 = arith.addf %115, %116 : vector<8x64xf32>
    %118 = arith.negf %117 : vector<8x64xf32>
    %119 = math.exp %118 : vector<8x64xf32>
    %cst_25 = arith.constant 1.000000e+00 : f32
    %120 = vector.broadcast %cst_25 : f32 to vector<8x64xf32>
    %121 = arith.addf %120, %119 : vector<8x64xf32>
    %122 = arith.divf %120, %121 : vector<8x64xf32>
    %123 = vector.extract_strided_slice %106 {offsets = [0, 128], sizes = [8, 64], strides = [1, 1]} : vector<8x192xf32> to vector<8x64xf32>
    %124 = vector.extract_strided_slice %105 {offsets = [0, 128], sizes = [8, 64], strides = [1, 1]} : vector<8x192xf32> to vector<8x64xf32>
    %125 = arith.mulf %114, %124 : vector<8x64xf32>
    %126 = arith.addf %123, %125 : vector<8x64xf32>
    %127 = math.tanh %126 : vector<8x64xf32>
    %cst_26 = arith.constant 1.000000e+00 : f32
    %128 = vector.broadcast %cst_26 : f32 to vector<8x64xf32>
    %129 = arith.subf %128, %122 : vector<8x64xf32>
    %130 = arith.mulf %129, %127 : vector<8x64xf32>
    %131 = arith.mulf %122, %101 : vector<8x64xf32>
    %132 = arith.addf %130, %131 : vector<8x64xf32>
    %133 = arith.truncf %132 : vector<8x64xf32> to vector<8x64xbf16>
    %cst_27 = arith.constant dense<0.000000e+00> : vector<8x192xf32>
    %134 = tpu.matmul %133, %6, %cst_27 {dimension_numbers = #tpu.dot_dimension_numbers<[1], [0], [0], [1], [0, 0, 1, 1], [], []>} : vector<8x64xbf16>, vector<64x192xbf16>, vector<8x192xf32> -> vector<8x192xf32>
    %135 = vector.broadcast %7 : vector<1x192xf32> to vector<8x192xf32>
    %136 = arith.addf %134, %135 : vector<8x192xf32>
    %137 = vector.extract_strided_slice %5 {offsets = [32, 0], sizes = [8, 192], strides = [1, 1]} : vector<56x192xf32> to vector<8x192xf32>
    %138 = vector.extract_strided_slice %137 {offsets = [0, 0], sizes = [8, 64], strides = [1, 1]} : vector<8x192xf32> to vector<8x64xf32>
    %139 = vector.extract_strided_slice %136 {offsets = [0, 0], sizes = [8, 64], strides = [1, 1]} : vector<8x192xf32> to vector<8x64xf32>
    %140 = arith.addf %138, %139 : vector<8x64xf32>
    %141 = arith.negf %140 : vector<8x64xf32>
    %142 = math.exp %141 : vector<8x64xf32>
    %cst_28 = arith.constant 1.000000e+00 : f32
    %143 = vector.broadcast %cst_28 : f32 to vector<8x64xf32>
    %144 = arith.addf %143, %142 : vector<8x64xf32>
    %145 = arith.divf %143, %144 : vector<8x64xf32>
    %146 = vector.extract_strided_slice %137 {offsets = [0, 64], sizes = [8, 64], strides = [1, 1]} : vector<8x192xf32> to vector<8x64xf32>
    %147 = vector.extract_strided_slice %136 {offsets = [0, 64], sizes = [8, 64], strides = [1, 1]} : vector<8x192xf32> to vector<8x64xf32>
    %148 = arith.addf %146, %147 : vector<8x64xf32>
    %149 = arith.negf %148 : vector<8x64xf32>
    %150 = math.exp %149 : vector<8x64xf32>
    %cst_29 = arith.constant 1.000000e+00 : f32
    %151 = vector.broadcast %cst_29 : f32 to vector<8x64xf32>
    %152 = arith.addf %151, %150 : vector<8x64xf32>
    %153 = arith.divf %151, %152 : vector<8x64xf32>
    %154 = vector.extract_strided_slice %137 {offsets = [0, 128], sizes = [8, 64], strides = [1, 1]} : vector<8x192xf32> to vector<8x64xf32>
    %155 = vector.extract_strided_slice %136 {offsets = [0, 128], sizes = [8, 64], strides = [1, 1]} : vector<8x192xf32> to vector<8x64xf32>
    %156 = arith.mulf %145, %155 : vector<8x64xf32>
    %157 = arith.addf %154, %156 : vector<8x64xf32>
    %158 = math.tanh %157 : vector<8x64xf32>
    %cst_30 = arith.constant 1.000000e+00 : f32
    %159 = vector.broadcast %cst_30 : f32 to vector<8x64xf32>
    %160 = arith.subf %159, %153 : vector<8x64xf32>
    %161 = arith.mulf %160, %158 : vector<8x64xf32>
    %162 = arith.mulf %153, %132 : vector<8x64xf32>
    %163 = arith.addf %161, %162 : vector<8x64xf32>
    %164 = arith.truncf %163 : vector<8x64xf32> to vector<8x64xbf16>
    %cst_31 = arith.constant dense<0.000000e+00> : vector<8x192xf32>
    %165 = tpu.matmul %164, %6, %cst_31 {dimension_numbers = #tpu.dot_dimension_numbers<[1], [0], [0], [1], [0, 0, 1, 1], [], []>} : vector<8x64xbf16>, vector<64x192xbf16>, vector<8x192xf32> -> vector<8x192xf32>
    %166 = vector.broadcast %7 : vector<1x192xf32> to vector<8x192xf32>
    %167 = arith.addf %165, %166 : vector<8x192xf32>
    %168 = vector.extract_strided_slice %5 {offsets = [40, 0], sizes = [8, 192], strides = [1, 1]} : vector<56x192xf32> to vector<8x192xf32>
    %169 = vector.extract_strided_slice %168 {offsets = [0, 0], sizes = [8, 64], strides = [1, 1]} : vector<8x192xf32> to vector<8x64xf32>
    %170 = vector.extract_strided_slice %167 {offsets = [0, 0], sizes = [8, 64], strides = [1, 1]} : vector<8x192xf32> to vector<8x64xf32>
    %171 = arith.addf %169, %170 : vector<8x64xf32>
    %172 = arith.negf %171 : vector<8x64xf32>
    %173 = math.exp %172 : vector<8x64xf32>
    %cst_32 = arith.constant 1.000000e+00 : f32
    %174 = vector.broadcast %cst_32 : f32 to vector<8x64xf32>
    %175 = arith.addf %174, %173 : vector<8x64xf32>
    %176 = arith.divf %174, %175 : vector<8x64xf32>
    %177 = vector.extract_strided_slice %168 {offsets = [0, 64], sizes = [8, 64], strides = [1, 1]} : vector<8x192xf32> to vector<8x64xf32>
    %178 = vector.extract_strided_slice %167 {offsets = [0, 64], sizes = [8, 64], strides = [1, 1]} : vector<8x192xf32> to vector<8x64xf32>
    %179 = arith.addf %177, %178 : vector<8x64xf32>
    %180 = arith.negf %179 : vector<8x64xf32>
    %181 = math.exp %180 : vector<8x64xf32>
    %cst_33 = arith.constant 1.000000e+00 : f32
    %182 = vector.broadcast %cst_33 : f32 to vector<8x64xf32>
    %183 = arith.addf %182, %181 : vector<8x64xf32>
    %184 = arith.divf %182, %183 : vector<8x64xf32>
    %185 = vector.extract_strided_slice %168 {offsets = [0, 128], sizes = [8, 64], strides = [1, 1]} : vector<8x192xf32> to vector<8x64xf32>
    %186 = vector.extract_strided_slice %167 {offsets = [0, 128], sizes = [8, 64], strides = [1, 1]} : vector<8x192xf32> to vector<8x64xf32>
    %187 = arith.mulf %176, %186 : vector<8x64xf32>
    %188 = arith.addf %185, %187 : vector<8x64xf32>
    %189 = math.tanh %188 : vector<8x64xf32>
    %cst_34 = arith.constant 1.000000e+00 : f32
    %190 = vector.broadcast %cst_34 : f32 to vector<8x64xf32>
    %191 = arith.subf %190, %184 : vector<8x64xf32>
    %192 = arith.mulf %191, %189 : vector<8x64xf32>
    %193 = arith.mulf %184, %163 : vector<8x64xf32>
    %194 = arith.addf %192, %193 : vector<8x64xf32>
    %195 = arith.truncf %194 : vector<8x64xf32> to vector<8x64xbf16>
    %cst_35 = arith.constant dense<0.000000e+00> : vector<8x192xf32>
    %196 = tpu.matmul %195, %6, %cst_35 {dimension_numbers = #tpu.dot_dimension_numbers<[1], [0], [0], [1], [0, 0, 1, 1], [], []>} : vector<8x64xbf16>, vector<64x192xbf16>, vector<8x192xf32> -> vector<8x192xf32>
    %197 = vector.broadcast %7 : vector<1x192xf32> to vector<8x192xf32>
    %198 = arith.addf %196, %197 : vector<8x192xf32>
    %199 = vector.extract_strided_slice %5 {offsets = [48, 0], sizes = [8, 192], strides = [1, 1]} : vector<56x192xf32> to vector<8x192xf32>
    %200 = vector.extract_strided_slice %199 {offsets = [0, 0], sizes = [8, 64], strides = [1, 1]} : vector<8x192xf32> to vector<8x64xf32>
    %201 = vector.extract_strided_slice %198 {offsets = [0, 0], sizes = [8, 64], strides = [1, 1]} : vector<8x192xf32> to vector<8x64xf32>
    %202 = arith.addf %200, %201 : vector<8x64xf32>
    %203 = arith.negf %202 : vector<8x64xf32>
    %204 = math.exp %203 : vector<8x64xf32>
    %cst_36 = arith.constant 1.000000e+00 : f32
    %205 = vector.broadcast %cst_36 : f32 to vector<8x64xf32>
    %206 = arith.addf %205, %204 : vector<8x64xf32>
    %207 = arith.divf %205, %206 : vector<8x64xf32>
    %208 = vector.extract_strided_slice %199 {offsets = [0, 64], sizes = [8, 64], strides = [1, 1]} : vector<8x192xf32> to vector<8x64xf32>
    %209 = vector.extract_strided_slice %198 {offsets = [0, 64], sizes = [8, 64], strides = [1, 1]} : vector<8x192xf32> to vector<8x64xf32>
    %210 = arith.addf %208, %209 : vector<8x64xf32>
    %211 = arith.negf %210 : vector<8x64xf32>
    %212 = math.exp %211 : vector<8x64xf32>
    %cst_37 = arith.constant 1.000000e+00 : f32
    %213 = vector.broadcast %cst_37 : f32 to vector<8x64xf32>
    %214 = arith.addf %213, %212 : vector<8x64xf32>
    %215 = arith.divf %213, %214 : vector<8x64xf32>
    %216 = vector.extract_strided_slice %199 {offsets = [0, 128], sizes = [8, 64], strides = [1, 1]} : vector<8x192xf32> to vector<8x64xf32>
    %217 = vector.extract_strided_slice %198 {offsets = [0, 128], sizes = [8, 64], strides = [1, 1]} : vector<8x192xf32> to vector<8x64xf32>
    %218 = arith.mulf %207, %217 : vector<8x64xf32>
    %219 = arith.addf %216, %218 : vector<8x64xf32>
    %220 = math.tanh %219 : vector<8x64xf32>
    %cst_38 = arith.constant 1.000000e+00 : f32
    %221 = vector.broadcast %cst_38 : f32 to vector<8x64xf32>
    %222 = arith.subf %221, %215 : vector<8x64xf32>
    %223 = arith.mulf %222, %220 : vector<8x64xf32>
    %224 = arith.mulf %215, %194 : vector<8x64xf32>
    %225 = arith.addf %223, %224 : vector<8x64xf32>
    %226 = tpu.concatenate %39, %70, %101, %132, %163, %194, %225 in 0 : vector<8x64xf32>, vector<8x64xf32>, vector<8x64xf32>, vector<8x64xf32>, vector<8x64xf32>, vector<8x64xf32>, vector<8x64xf32> -> vector<56x64xf32>
    %227 = arith.truncf %226 : vector<56x64xf32> to vector<56x64xbf16>
    %c0_39 = arith.constant 0 : index
    %c0_40 = arith.constant 0 : index
    %228 = vector.load %arg6[%c0_39, %c0_40] : memref<64x128xbf16, #tpu.memory_space<vmem>>, vector<64x128xbf16>
    %cst_41 = arith.constant dense<0.000000e+00> : vector<56x128xf32>
    %229 = tpu.matmul %227, %228, %cst_41 {dimension_numbers = #tpu.dot_dimension_numbers<[1], [0], [0], [1], [0, 0, 1, 1], [], []>} : vector<56x64xbf16>, vector<64x128xbf16>, vector<56x128xf32> -> vector<56x128xf32>
    %c0_42 = arith.constant 0 : index
    %c0_43 = arith.constant 0 : index
    %230 = vector.load %arg7[%c0_42, %c0_43] : memref<1x128xf32, #tpu.memory_space<vmem>>, vector<1x128xf32>
    %231 = vector.broadcast %230 : vector<1x128xf32> to vector<56x128xf32>
    %232 = arith.addf %229, %231 : vector<56x128xf32>
    %233 = arith.truncf %232 : vector<56x128xf32> to vector<56x128xbf16>
    %c0_44 = arith.constant 0 : index
    %c0_45 = arith.constant 0 : index
    %234 = vector.load %arg8[%c0_44, %c0_45] : memref<128x256xbf16, #tpu.memory_space<vmem>>, vector<128x256xbf16>
    %cst_46 = arith.constant dense<0.000000e+00> : vector<56x256xf32>
    %235 = tpu.matmul %233, %234, %cst_46 {dimension_numbers = #tpu.dot_dimension_numbers<[1], [0], [0], [1], [0, 0, 1, 1], [], []>} : vector<56x128xbf16>, vector<128x256xbf16>, vector<56x256xf32> -> vector<56x256xf32>
    %c0_47 = arith.constant 0 : index
    %c0_48 = arith.constant 0 : index
    %236 = vector.load %arg9[%c0_47, %c0_48] : memref<1x256xf32, #tpu.memory_space<vmem>>, vector<1x256xf32>
    %237 = vector.broadcast %236 : vector<1x256xf32> to vector<56x256xf32>
    %238 = arith.addf %235, %237 : vector<56x256xf32>
    %239 = arith.truncf %238 : vector<56x256xf32> to vector<56x256xbf16>
    %c0_49 = arith.constant 0 : index
    %c0_50 = arith.constant 0 : index
    %240 = vector.load %arg10[%c0_49, %c0_50] : memref<256x128xbf16, #tpu.memory_space<vmem>>, vector<256x128xbf16>
    %cst_51 = arith.constant dense<0.000000e+00> : vector<56x128xf32>
    %241 = tpu.matmul %239, %240, %cst_51 {dimension_numbers = #tpu.dot_dimension_numbers<[1], [0], [0], [1], [0, 0, 1, 1], [], []>} : vector<56x256xbf16>, vector<256x128xbf16>, vector<56x128xf32> -> vector<56x128xf32>
    %c0_52 = arith.constant 0 : index
    %c0_53 = arith.constant 0 : index
    %242 = vector.load %arg11[%c0_52, %c0_53] : memref<1x128xf32, #tpu.memory_space<vmem>>, vector<1x128xf32>
    %243 = vector.broadcast %242 : vector<1x128xf32> to vector<56x128xf32>
    %244 = arith.addf %241, %243 : vector<56x128xf32>
    %c0_54 = arith.constant 0 : index
    %c0_55 = arith.constant 0 : index
    %245 = vector.load %arg12[%c0_54, %c0_55] : memref<56x128xf32, #tpu.memory_space<vmem>>, vector<56x128xf32>
    tpu.vector_store %arg12[%c0_54, %c0_55], %244 {strides = array<i32>} : memref<56x128xf32, #tpu.memory_space<vmem>>, vector<56x128xf32>,
    return
  }
}

</mosaic_0001>

<llo_original>
// kernel: _lambda_.2
$region0: #{_lambda_.2}
  #allocation0 [shape = 'u32[]', space=smem, size = 0x4, offset = 0x4, fixed_abs, tag = 'smem constant byte address 0x4 - core index']
  #allocation1 [shape = 'u32[72,128]{1,0:T(1,128)}', space=vmem, size = 0x9000, scoped, tag = 'internal scratch']
  %s0 = inlined_call_operand.vmem [shape: bf16[2,64,32], index: 0, kind: input, shape index: {}]
  %s1 = inlined_call_operand.vmem [shape: bf16[2,32,96], index: 1, kind: input, shape index: {}]
  %s2 = inlined_call_operand.vmem [shape: bf16[2,32,96], index: 2, kind: input, shape index: {}]
  %s3 = inlined_call_operand.vmem [shape: f32[2,1,96], index: 3, kind: input, shape index: {}]
  %s4 = inlined_call_operand.vmem [shape: f32[2,1,96], index: 4, kind: input, shape index: {}]
  %s5 = inlined_call_operand.vmem [shape: f32[2,8,32], index: 5, kind: output, shape index: {}]
  %s6 = sld [smem:[#allocation0]]
  $region53: #{_lambda_.2} parent=0
    _
  %s8 = ssub.s32 1, %s6
  %s9 = scalar_select 0, %s8, %s6
  loop: start=0, step=1, limit=4
  $region2: #{_lambda_.2} parent=0 // loop_pre_header
    _
  $region3: #{_lambda_.2} parent=0 // loop_header
    %s11 = sphi 0, %s15
    %p12 = scmp.ge.s32.totalorder %s11, 4
    %s21 = sphi 0, %s23
    %s24 = sphi 0, %s21
    %s25 = sphi 0, %s24
    %s41 = sphi 0, %s25
    %s47 = sphi 0, %s49
    %s50 = sphi 0, %s47
    %s51 = sphi 0, %s50
    %s67 = sphi 0, %s51
    %s73 = sphi 0, %s75
    %s76 = sphi 0, %s73
    %s77 = sphi 0, %s76
    %s93 = sphi 0, %s77
    %s99 = sphi 0, %s101
    %s102 = sphi 0, %s99
    %s103 = sphi 0, %s102
    %s119 = sphi 0, %s103
    %s125 = sphi 0, %s127
    %s128 = sphi 0, %s125
    %s129 = sphi 0, %s128
    %s145 = sphi 0, %s129
    %s151 = sphi 0, %s153
    %s154 = sphi 0, %s151
    %s155 = sphi 0, %s154
    %s171 = sphi 0, %s155
  $region4: #{_lambda_.2} parent=0 // loop_header_branch
    %14 = sbr.rel (%p12) target = $region8
  $region5: #{_lambda_.2} parent=0 // loop_body
    %s16 = ssub.s32 %s11, 1
    %s17 = ssub.s32 %s11, 2
    %s18 = sadd.s32 %s11, 1
    %s19 = ssub.s32 %s11, %s18
    %p20 = scmp.eq.s32.totalorder %s19, 0
    %s22 = sadd.s32 %s21, 1
    %s23 = scalar_select %p20, %s21, %s22
    %p26 = pneg %p20
    %p27 = scmp.eq.s32.totalorder %s11, 1
    %p28 = por %p26, %p27
    %p29 = scmp.ne.s32.totalorder %s21, %s24
    %p30 = scmp.eq.s32.totalorder %s11, 0
    %p31 = por %p29, %p30
    %p32 = scmp.ne.s32.totalorder %s21, %s24
    %p33 = scmp.eq.s32.totalorder %s16, 1
    %p34 = por %p32, %p33
    %p35 = scmp.ne.s32.totalorder %s24, %s25
    %p36 = scmp.eq.s32.totalorder %s16, 0
    %p37 = por %p35, %p36
    %p38 = scmp.ne.s32.totalorder %s24, %s25
    %p39 = scmp.eq.s32.totalorder %s17, 1
    %p40 = por %p38, %p39
    %p42 = scmp.ne.s32.totalorder %s25, %s41
    %p43 = scmp.eq.s32.totalorder %s17, 0
    %p44 = por %p42, %p43
    %s45 = ssub.s32 %s11, %s18
    %p46 = scmp.eq.s32.totalorder %s45, 0
    %s48 = sadd.s32 %s47, 1
    %s49 = scalar_select %p46, %s47, %s48
    %p52 = pneg %p46
    %p53 = scmp.eq.s32.totalorder %s11, 1
    %p54 = por %p52, %p53
    %p55 = scmp.ne.s32.totalorder %s47, %s50
    %p56 = scmp.eq.s32.totalorder %s11, 0
    %p57 = por %p55, %p56
    %p58 = scmp.ne.s32.totalorder %s47, %s50
    %p59 = scmp.eq.s32.totalorder %s16, 1
    %p60 = por %p58, %p59
    %p61 = scmp.ne.s32.totalorder %s50, %s51
    %p62 = scmp.eq.s32.totalorder %s16, 0
    %p63 = por %p61, %p62
    %p64 = scmp.ne.s32.totalorder %s50, %s51
    %p65 = scmp.eq.s32.totalorder %s17, 1
    %p66 = por %p64, %p65
    %p68 = scmp.ne.s32.totalorder %s51, %s67
    %p69 = scmp.eq.s32.totalorder %s17, 0
    %p70 = por %p68, %p69
    %s71 = ssub.s32 %s11, %s18
    %p72 = scmp.eq.s32.totalorder %s71, 0
    %s74 = sadd.s32 %s73, 1
    %s75 = scalar_select %p72, %s73, %s74
    %p78 = pneg %p72
    %p79 = scmp.eq.s32.totalorder %s11, 1
    %p80 = por %p78, %p79
    %p81 = scmp.ne.s32.totalorder %s73, %s76
    %p82 = scmp.eq.s32.totalorder %s11, 0
    %p83 = por %p81, %p82
    %p84 = scmp.ne.s32.totalorder %s73, %s76
    %p85 = scmp.eq.s32.totalorder %s16, 1
    %p86 = por %p84, %p85
    %p87 = scmp.ne.s32.totalorder %s76, %s77
    %p88 = scmp.eq.s32.totalorder %s16, 0
    %p89 = por %p87, %p88
    %p90 = scmp.ne.s32.totalorder %s76, %s77
    %p91 = scmp.eq.s32.totalorder %s17, 1
    %p92 = por %p90, %p91
    %p94 = scmp.ne.s32.totalorder %s77, %s93
    %p95 = scmp.eq.s32.totalorder %s17, 0
    %p96 = por %p94, %p95
    %s97 = ssub.s32 %s11, %s18
    %p98 = scmp.eq.s32.totalorder %s97, 0
    %s100 = sadd.s32 %s99, 1
    %s101 = scalar_select %p98, %s99, %s100
    %p104 = pneg %p98
    %p105 = scmp.eq.s32.totalorder %s11, 1
    %p106 = por %p104, %p105
    %p107 = scmp.ne.s32.totalorder %s99, %s102
    %p108 = scmp.eq.s32.totalorder %s11, 0
    %p109 = por %p107, %p108
    %p110 = scmp.ne.s32.totalorder %s99, %s102
    %p111 = scmp.eq.s32.totalorder %s16, 1
    %p112 = por %p110, %p111
    %p113 = scmp.ne.s32.totalorder %s102, %s103
    %p114 = scmp.eq.s32.totalorder %s16, 0
    %p115 = por %p113, %p114
    %p116 = scmp.ne.s32.totalorder %s102, %s103
    %p117 = scmp.eq.s32.totalorder %s17, 1
    %p118 = por %p116, %p117
    %p120 = scmp.ne.s32.totalorder %s103, %s119
    %p121 = scmp.eq.s32.totalorder %s17, 0
    %p122 = por %p120, %p121
    %s123 = ssub.s32 %s11, %s18
    %p124 = scmp.eq.s32.totalorder %s123, 0
    %s126 = sadd.s32 %s125, 1
    %s127 = scalar_select %p124, %s125, %s126
    %p130 = pneg %p124
    %p131 = scmp.eq.s32.totalorder %s11, 1
    %p132 = por %p130, %p131
    %p133 = scmp.ne.s32.totalorder %s125, %s128
    %p134 = scmp.eq.s32.totalorder %s11, 0
    %p135 = por %p133, %p134
    %p136 = scmp.ne.s32.totalorder %s125, %s128
    %p137 = scmp.eq.s32.totalorder %s16, 1
    %p138 = por %p136, %p137
    %p139 = scmp.ne.s32.totalorder %s128, %s129
    %p140 = scmp.eq.s32.totalorder %s16, 0
    %p141 = por %p139, %p140
    %p142 = scmp.ne.s32.totalorder %s128, %s129
    %p143 = scmp.eq.s32.totalorder %s17, 1
    %p144 = por %p142, %p143
    %p146 = scmp.ne.s32.totalorder %s129, %s145
    %p147 = scmp.eq.s32.totalorder %s17, 0
    %p148 = por %p146, %p147
    %s149 = ssub.s32 %s11, %s18
    %p150 = scmp.eq.s32.totalorder %s149, 0
    %s152 = sadd.s32 %s151, 1
    %s153 = scalar_select %p150, %s151, %s152
    %p156 = pneg %p150
    %p157 = scmp.eq.s32.totalorder %s11, 1
    %p158 = por %p156, %p157
    %p159 = scmp.ne.s32.totalorder %s151, %s154
    %p160 = scmp.eq.s32.totalorder %s11, 0
    %p161 = por %p159, %p160
    %p162 = scmp.ne.s32.totalorder %s151, %s154
    %p163 = scmp.eq.s32.totalorder %s16, 1
    %p164 = por %p162, %p163
    %p165 = scmp.ne.s32.totalorder %s154, %s155
    %p166 = scmp.eq.s32.totalorder %s16, 0
    %p167 = por %p165, %p166
    %p168 = scmp.ne.s32.totalorder %s154, %s155
    %p169 = scmp.eq.s32.totalorder %s17, 1
    %p170 = por %p168, %p169
    %p172 = scmp.ne.s32.totalorder %s155, %s171
    %p173 = scmp.eq.s32.totalorder %s17, 0
    %p174 = por %p172, %p173
    %p175 = scmp.le.s32.totalorder 1, %s11
    %p176 = scmp.lt.s32.totalorder %s11, 3
    %p177 = pnand %p175, %p176
    %p178 = pneg %p177
    // Predicated region
    $region9: #{_lambda_.2} parent=5 // pred_check
      _
    $region10: #{_lambda_.2} parent=5 // pred_check_branch
      %180 = sbr.rel (%p177) target = $region12
    $region11: #{_lambda_.2} parent=5 // pred_region
      %s181 = ssub.s32 %s11, 1
    $region12: #{_lambda_.2} parent=5 // pred_fallthru
      _
    %p182 = scmp.lt.s32.totalorder %s11, 2
    // Predicated region
    $region13: #{_lambda_.2} parent=5 // pred_check
      %p183 = pneg %p182
    $region14: #{_lambda_.2} parent=5 // pred_check_branch
      %185 = sbr.rel (%p183) target = $region16
    $region15: #{_lambda_.2} parent=5 // pred_region
      // Predicated region
      $region17: #{_lambda_.2} parent=15 // pred_check
        %p186 = pneg %p31
      $region18: #{_lambda_.2} parent=15 // pred_check_branch
        %188 = sbr.rel (%p186) target = $region20
      $region19: #{_lambda_.2} parent=15 // pred_region
        %p189 = scmp.lt.s32.totalorder %s11, 1
        %s190 = scalar_select %p189, %s11, 1
        %s191 = smul.addr %s190, 8
        %s192 = smul.addr %s191, 4
        %s193 = scalar_lea.vmem %s0, %s192
      $region20: #{_lambda_.2} parent=15 // pred_fallthru
        _
      // Predicated region
      $region21: #{_lambda_.2} parent=15 // pred_check
        %p194 = pneg %p57
      $region22: #{_lambda_.2} parent=15 // pred_check_branch
        %196 = sbr.rel (%p194) target = $region24
      $region23: #{_lambda_.2} parent=15 // pred_region
        %p197 = scmp.lt.s32.totalorder %s11, 1
        %s198 = scalar_select %p197, %s11, 1
        %s199 = smul.addr %s198, 4
        %s200 = smul.addr %s199, 4
        %s201 = scalar_lea.vmem %s1, %s200
      $region24: #{_lambda_.2} parent=15 // pred_fallthru
        _
      // Predicated region
      $region25: #{_lambda_.2} parent=15 // pred_check
        %p202 = pneg %p83
      $region26: #{_lambda_.2} parent=15 // pred_check_branch
        %204 = sbr.rel (%p202) target = $region28
      $region27: #{_lambda_.2} parent=15 // pred_region
        %p205 = scmp.lt.s32.totalorder %s11, 1
        %s206 = scalar_select %p205, %s11, 1
        %s207 = smul.addr %s206, 4
        %s208 = smul.addr %s207, 4
        %s209 = scalar_lea.vmem %s2, %s208
      $region28: #{_lambda_.2} parent=15 // pred_fallthru
        _
      // Predicated region
      $region29: #{_lambda_.2} parent=15 // pred_check
        %p210 = pneg %p109
      $region30: #{_lambda_.2} parent=15 // pred_check_branch
        %212 = sbr.rel (%p210) target = $region32
      $region31: #{_lambda_.2} parent=15 // pred_region
        %p213 = scmp.lt.s32.totalorder %s11, 1
        %s214 = scalar_select %p213, %s11, 1
        %s215 = scalar_lea.vmem %s3, %s214
      $region32: #{_lambda_.2} parent=15 // pred_fallthru
        _
      // Predicated region
      $region33: #{_lambda_.2} parent=15 // pred_check
        %p216 = pneg %p135
      $region34: #{_lambda_.2} parent=15 // pred_check_branch
        %218 = sbr.rel (%p216) target = $region36
      $region35: #{_lambda_.2} parent=15 // pred_region
        %p219 = scmp.lt.s32.totalorder %s11, 1
        %s220 = scalar_select %p219, %s11, 1
        %s221 = scalar_lea.vmem %s4, %s220
      $region36: #{_lambda_.2} parent=15 // pred_fallthru
        _
    $region16: #{_lambda_.2} parent=5 // pred_fallthru
      _
    %p222 = scmp.le.s32.totalorder 1, %s11
    %p223 = scmp.lt.s32.totalorder %s11, 3
    %p224 = pnand %p222, %p223
    %p225 = pneg %p224
    // Predicated region
    $region37: #{_lambda_.2} parent=5 // pred_check
      _
    $region38: #{_lambda_.2} parent=5 // pred_check_branch
      %227 = sbr.rel (%p224) target = $region40
    $region39: #{_lambda_.2} parent=5 // pred_region
      %s228 = ssub.s32 %s11, 1
      %p229 = scmp.lt.s32.totalorder %s16, 1
      %s230 = scalar_select %p229, %s16, 1
      %s231 = smul.addr %s230, 8
      %s232 = smul.addr %s231, 4
      %s233 = scalar_lea.vmem %s0, %s232
      %p234 = pneg %p37
      %p235 = pneg %p34
      %p236 = scmp.lt.s32.totalorder %s16, 1
      %s237 = scalar_select %p236, %s16, 1
      %s238 = smul.addr %s237, 4
      %s239 = smul.addr %s238, 4
      %s240 = scalar_lea.vmem %s1, %s239
      %p241 = pneg %p63
      %p242 = pneg %p60
      %p243 = scmp.lt.s32.totalorder %s16, 1
      %s244 = scalar_select %p243, %s16, 1
      %s245 = smul.addr %s244, 4
      %s246 = smul.addr %s245, 4
      %s247 = scalar_lea.vmem %s2, %s246
      %p248 = pneg %p89
      %p249 = pneg %p86
      %p250 = scmp.lt.s32.totalorder %s16, 1
      %s251 = scalar_select %p250, %s16, 1
      %s252 = scalar_lea.vmem %s3, %s251
      %p253 = pneg %p115
      %p254 = pneg %p112
      %p255 = scmp.lt.s32.totalorder %s16, 1
      %s256 = scalar_select %p255, %s16, 1
      %s257 = scalar_lea.vmem %s4, %s256
      %p258 = pneg %p141
      %p259 = pneg %p138
      %p260 = pneg %p167
      %p261 = pneg %p164
      %p262 = scmp.lt.s32.totalorder %s16, 1
      %s263 = scalar_select %p262, %s16, 1
      %s264 = smul.addr %s263, 8
      %s265 = scalar_lea.vmem %s5, %s264
      %p266 = scmp.lt.s32.totalorder %s16, 1
      %s267 = scalar_select %p266, %s16, 1
      %s268 = smul.addr %s267, 8
      %s269 = smul.addr %s268, 4
      %s270 = scalar_lea.vmem %s0, %s269
      %p271 = scmp.lt.s32.totalorder %s16, 1
      %s272 = scalar_select %p271, %s16, 1
      %s273 = smul.addr %s272, 4
      %s274 = smul.addr %s273, 4
      %s275 = scalar_lea.vmem %s1, %s274
      %p276 = scmp.lt.s32.totalorder %s16, 1
      %s277 = scalar_select %p276, %s16, 1
      %s278 = smul.addr %s277, 4
      %s279 = smul.addr %s278, 4
      %s280 = scalar_lea.vmem %s2, %s279
      %p281 = scmp.lt.s32.totalorder %s16, 1
      %s282 = scalar_select %p281, %s16, 1
      %s283 = scalar_lea.vmem %s3, %s282
      %p284 = scmp.lt.s32.totalorder %s16, 1
      %s285 = scalar_select %p284, %s16, 1
      %s286 = scalar_lea.vmem %s4, %s285
      %p287 = scmp.lt.s32.totalorder %s16, 1
      %s288 = scalar_select %p287, %s16, 1
      %s289 = smul.addr %s288, 8
      %s290 = scalar_lea.vmem %s5, %s289
      %v292 = vld [vmem:[%s270] sm:$0xf]
      %v293 = vld [vmem:[%s270 + $0x4] sm:$0xf]
      %v294 = vld [vmem:[%s270 + $0x8] sm:$0xf]
      %v295 = vld [vmem:[%s270 + $0xc] sm:$0xf]
      %v296 = vld [vmem:[%s270 + $0x10] sm:$0xf]
      %v297 = vld [vmem:[%s270 + $0x14] sm:$0xf]
      %v298 = vld [vmem:[%s270 + $0x18] sm:$0xf]
      %v299 = vld [vmem:[%s270 + $0x1c] sm:$0xf]
      %v300 = vld [vmem:[%s275] sm:$0xf]
      %v301 = vld [vmem:[%s275 + $0x4] sm:$0xf]
      %v302 = vld [vmem:[%s275 + $0x8] sm:$0xf]
      %v303 = vld [vmem:[%s275 + $0xc] sm:$0xf]
      %v304 = vld [vmem:[%s283] sm:$0x1]
      %v306 = vperm.slane %v304, 0
      %v316 = vunpack.c.l.b16 %v292
      %v317 = vunpack.c.l.b16 %v293
      %v318 = vunpack.c.l.b16 %v294
      %v319 = vunpack.c.l.b16 %v295
      %v320 = vunpack.c.l.b16 %v296
      %v321 = vunpack.c.l.b16 %v297
      %v322 = vunpack.c.l.b16 %v298
      %v323 = vunpack.c.l.b16 %v299
      %v324 = vpack.c.b16 %v317, %v316
      %v325 = vpack.c.b16 %v319, %v318
      %v326 = vpack.c.b16 %v321, %v320
      %v327 = vpack.c.b16 %v323, %v322
      %v332 = vunpack.c.l.b16 %v300
      %v333 = vunpack.c.l.b16 %v301
      %v334 = vunpack.c.l.b16 %v302
      %v335 = vunpack.c.l.b16 %v303
      %v336 = vpack.c.b16 %v333, %v332
      %v337 = vpack.c.b16 %v335, %v334
      %vm340 = vcmask 261120
      %v342 = vsel %vm340, %v324, 0
      %v345 = vsel %vm340, %v325, 0
      %v348 = vsel %vm340, %v326, 0
      %v351 = vsel %vm340, %v327, 0
      %353 = vmatpush.bf16.msra.mxu0 0
      %354 = vmatpush.bf16.msra.mxu0 0
      %355 = vmatpush.bf16.msra.mxu0 0
      %356 = vmatpush.bf16.msra.mxu0 0
      %357 = vmatpush.bf16.msra.mxu0 0
      %358 = vmatpush.bf16.msra.mxu0 0
      %359 = vmatpush.bf16.msra.mxu0 %v337
      %360 = vmatpush.bf16.msra.mxu0 %v336
      %361 = vmatmul.bf16.gmra.mxu0 %v342
      %v362 = vpop.f32.mrf.mxu0
      %v363 = vadd.f32 %v306, %v362
      %v364 = vpop.f32.mrf.mxu0
      %v365 = vadd.f32 %v306, %v364
      %366 = vmatmul.bf16.gmra.mxu0 %v345
      %v367 = vpop.f32.mrf.mxu0
      %v368 = vadd.f32 %v306, %v367
      %v369 = vpop.f32.mrf.mxu0
      %v370 = vadd.f32 %v306, %v369
      %371 = vmatmul.bf16.gmra.mxu0 %v348
      %v372 = vpop.f32.mrf.mxu0
      %v373 = vadd.f32 %v306, %v372
      %v374 = vpop.f32.mrf.mxu0
      %v375 = vadd.f32 %v306, %v374
      %376 = vmatmul.bf16.gmra.mxu0 %v351
      %v377 = vpop.f32.mrf.mxu0
      %v378 = vadd.f32 %v306, %v377
      %v379 = vpop.f32.mrf.mxu0
      %v380 = vadd.f32 %v306, %v379
      %381 = vdwg.mxu0
      %v382 = vld [vmem:[%s280] sm:$0xf]
      %v383 = vld [vmem:[%s280 + $0x4] sm:$0xf]
      %v384 = vld [vmem:[%s280 + $0x8] sm:$0xf]
      %v385 = vld [vmem:[%s280 + $0xc] sm:$0xf]
      %v386 = vld [vmem:[%s286] sm:$0x1]
      %v388 = vperm.slane %v386, 0
      %v394 = vunpack.c.l.b16 %v382
      %v395 = vunpack.c.l.b16 %v383
      %v396 = vunpack.c.l.b16 %v384
      %v397 = vunpack.c.l.b16 %v385
      %v398 = vpack.c.b16 %v395, %v394
      %v399 = vpack.c.b16 %v397, %v396
      %v403 = vsel %vm340, 0, 0
      %405 = vmatpush.bf16.msra.mxu0 0
      %406 = vmatpush.bf16.msra.mxu0 0
      %407 = vmatpush.bf16.msra.mxu0 0
      %408 = vmatpush.bf16.msra.mxu0 0
      %409 = vmatpush.bf16.msra.mxu0 0
      %410 = vmatpush.bf16.msra.mxu0 0
      %411 = vmatpush.bf16.msra.mxu0 %v399
      %412 = vmatpush.bf16.msra.mxu0 %v398
      %413 = vmatmul.bf16.gmra.mxu0 %v403
      %v414 = vpop.f32.mrf.mxu0
      %v415 = vadd.f32 %v388, %v414
      %v416 = vpop.f32.mrf.mxu0
      %417 = vdwg.mxu0
      %v418 = vadd.f32 %v363, %v415
      %v419 = vxor.u32 %v418, 2147483648
      %v420 = vmul.f32 %v419, 1.442695
      %v421 = vpow.pop %v420
      %v422 = vadd.f32 %v421, 1.0
      %v423 = vrcp.pop %v422
      %v424 = vmul.f32 %v422, %v423
      %v425 = vsub.f32 1.0, %v424
      %v426 = vmul.f32 %v423, %v425
      %v427 = vadd.f32 %v423, %v426
      %vm428 = vweird.f32 %v422
      %vm429 = vweird.f32 %v423
      %vm430 = vmor %vm428, %vm429
      %v431 = vsel %vm430, %v423, %v427
      %v432 = vand.u32 2147483647, %v422
      %vm433 = vcmp.eq.f32.partialorder %v432, 8.507059e+37
      %v434 = vand.u32 %v422, 2147483648
      %v435 = vor.u32 1.1754944e-38, %v434
      %v436 = vsel %vm433, %v435, %v431
      %v437 = vmul.f32 1.0, %v436
      %439 = vrot.lane.b32.xlu0 %v415, 64
      %v440 = vpop.permute.xlu0 %439
      %v442 = vmul.f32 %v437, %v440
      %444 = vrot.lane.b32.xlu0 %v442, 64
      %v445 = vpop.permute.xlu0 %444
      %v447 = vadd.f32 %v363, %v445
      %v448 = vtanh.pop %v447
      %v449 = vsub.f32 1.0, %v437
      %451 = vrot.lane.b32.xlu0 %v448, 96
      %v452 = vpop.permute.xlu0 %451
      %v454 = vmul.f32 %v449, %v452
      %v455 = vmul.f32 %v437, 0.0
      %v456 = vadd.f32 %v454, %v455
      %v457 = vpack.c.bf16 %v456, %v456
      %459 = vrot.lane.b32.xlu0 %v457, 96
      %v460 = vpop.permute.xlu0 %459
      %v462 = vsel %vm340, %v460, 0
      %464 = vmatpush.bf16.msra.mxu0 0
      %465 = vmatpush.bf16.msra.mxu0 0
      %466 = vmatpush.bf16.msra.mxu0 0
      %467 = vmatpush.bf16.msra.mxu0 0
      %468 = vmatpush.bf16.msra.mxu0 0
      %469 = vmatpush.bf16.msra.mxu0 0
      %470 = vmatpush.bf16.msra.mxu0 %v399
      %471 = vmatpush.bf16.msra.mxu0 %v398
      %472 = vmatmul.bf16.gmra.mxu0 %v462
      %v473 = vpop.f32.mrf.mxu0
      %v474 = vadd.f32 %v388, %v473
      %v475 = vpop.f32.mrf.mxu0
      %476 = vdwg.mxu0
      %v477 = vadd.f32 %v365, %v474
      %v478 = vxor.u32 %v477, 2147483648
      %v479 = vmul.f32 %v478, 1.442695
      %v480 = vpow.pop %v479
      %v481 = vadd.f32 %v480, 1.0
      %v482 = vrcp.pop %v481
      %v483 = vmul.f32 %v481, %v482
      %v484 = vsub.f32 1.0, %v483
      %v485 = vmul.f32 %v482, %v484
      %v486 = vadd.f32 %v482, %v485
      %vm487 = vweird.f32 %v481
      %vm488 = vweird.f32 %v482
      %vm489 = vmor %vm487, %vm488
      %v490 = vsel %vm489, %v482, %v486
      %v491 = vand.u32 2147483647, %v481
      %vm492 = vcmp.eq.f32.partialorder %v491, 8.507059e+37
      %v493 = vand.u32 %v481, 2147483648
      %v494 = vor.u32 1.1754944e-38, %v493
      %v495 = vsel %vm492, %v494, %v490
      %v496 = vmul.f32 1.0, %v495
      %498 = vrot.lane.b32.xlu0 %v474, 64
      %v499 = vpop.permute.xlu0 %498
      %v501 = vmul.f32 %v496, %v499
      %503 = vrot.lane.b32.xlu0 %v501, 64
      %v504 = vpop.permute.xlu0 %503
      %v506 = vadd.f32 %v365, %v504
      %v507 = vtanh.pop %v506
      %v508 = vsub.f32 1.0, %v496
      %510 = vrot.lane.b32.xlu0 %v507, 96
      %v511 = vpop.permute.xlu0 %510
      %v513 = vmul.f32 %v508, %v511
      %v514 = vmul.f32 %v496, %v456
      %v515 = vadd.f32 %v513, %v514
      %v516 = vpack.c.bf16 %v515, %v515
      %518 = vrot.lane.b32.xlu0 %v516, 96
      %v519 = vpop.permute.xlu0 %518
      %v521 = vsel %vm340, %v519, 0
      %523 = vmatpush.bf16.msra.mxu0 0
      %524 = vmatpush.bf16.msra.mxu0 0
      %525 = vmatpush.bf16.msra.mxu0 0
      %526 = vmatpush.bf16.msra.mxu0 0
      %527 = vmatpush.bf16.msra.mxu0 0
      %528 = vmatpush.bf16.msra.mxu0 0
      %529 = vmatpush.bf16.msra.mxu0 %v399
      %530 = vmatpush.bf16.msra.mxu0 %v398
      %531 = vmatmul.bf16.gmra.mxu0 %v521
      %v532 = vpop.f32.mrf.mxu0
      %v533 = vadd.f32 %v388, %v532
      %v534 = vpop.f32.mrf.mxu0
      %535 = vdwg.mxu0
      %v536 = vadd.f32 %v368, %v533
      %v537 = vxor.u32 %v536, 2147483648
      %v538 = vmul.f32 %v537, 1.442695
      %v539 = vpow.pop %v538
      %v540 = vadd.f32 %v539, 1.0
      %v541 = vrcp.pop %v540
      %v542 = vmul.f32 %v540, %v541
      %v543 = vsub.f32 1.0, %v542
      %v544 = vmul.f32 %v541, %v543
      %v545 = vadd.f32 %v541, %v544
      %vm546 = vweird.f32 %v540
      %vm547 = vweird.f32 %v541
      %vm548 = vmor %vm546, %vm547
      %v549 = vsel %vm548, %v541, %v545
      %v550 = vand.u32 2147483647, %v540
      %vm551 = vcmp.eq.f32.partialorder %v550, 8.507059e+37
      %v552 = vand.u32 %v540, 2147483648
      %v553 = vor.u32 1.1754944e-38, %v552
      %v554 = vsel %vm551, %v553, %v549
      %v555 = vmul.f32 1.0, %v554
      %557 = vrot.lane.b32.xlu0 %v533, 64
      %v558 = vpop.permute.xlu0 %557
      %v560 = vmul.f32 %v555, %v558
      %562 = vrot.lane.b32.xlu0 %v560, 64
      %v563 = vpop.permute.xlu0 %562
      %v565 = vadd.f32 %v368, %v563
      %v566 = vtanh.pop %v565
      %v567 = vsub.f32 1.0, %v555
      %569 = vrot.lane.b32.xlu0 %v566, 96
      %v570 = vpop.permute.xlu0 %569
      %v572 = vmul.f32 %v567, %v570
      %v573 = vmul.f32 %v555, %v515
      %v574 = vadd.f32 %v572, %v573
      %v575 = vpack.c.bf16 %v574, %v574
      %577 = vrot.lane.b32.xlu0 %v575, 96
      %v578 = vpop.permute.xlu0 %577
      %v580 = vsel %vm340, %v578, 0
      %582 = vmatpush.bf16.msra.mxu0 0
      %583 = vmatpush.bf16.msra.mxu0 0
      %584 = vmatpush.bf16.msra.mxu0 0
      %585 = vmatpush.bf16.msra.mxu0 0
      %586 = vmatpush.bf16.msra.mxu0 0
      %587 = vmatpush.bf16.msra.mxu0 0
      %588 = vmatpush.bf16.msra.mxu0 %v399
      %589 = vmatpush.bf16.msra.mxu0 %v398
      %590 = vmatmul.bf16.gmra.mxu0 %v580
      %v591 = vpop.f32.mrf.mxu0
      %v592 = vadd.f32 %v388, %v591
      %v593 = vpop.f32.mrf.mxu0
      %594 = vdwg.mxu0
      %v595 = vadd.f32 %v370, %v592
      %v596 = vxor.u32 %v595, 2147483648
      %v597 = vmul.f32 %v596, 1.442695
      %v598 = vpow.pop %v597
      %v599 = vadd.f32 %v598, 1.0
      %v600 = vrcp.pop %v599
      %v601 = vmul.f32 %v599, %v600
      %v602 = vsub.f32 1.0, %v601
      %v603 = vmul.f32 %v600, %v602
      %v604 = vadd.f32 %v600, %v603
      %vm605 = vweird.f32 %v599
      %vm606 = vweird.f32 %v600
      %vm607 = vmor %vm605, %vm606
      %v608 = vsel %vm607, %v600, %v604
      %v609 = vand.u32 2147483647, %v599
      %vm610 = vcmp.eq.f32.partialorder %v609, 8.507059e+37
      %v611 = vand.u32 %v599, 2147483648
      %v612 = vor.u32 1.1754944e-38, %v611
      %v613 = vsel %vm610, %v612, %v608
      %v614 = vmul.f32 1.0, %v613
      %616 = vrot.lane.b32.xlu0 %v592, 64
      %v617 = vpop.permute.xlu0 %616
      %v619 = vmul.f32 %v614, %v617
      %621 = vrot.lane.b32.xlu0 %v619, 64
      %v622 = vpop.permute.xlu0 %621
      %v624 = vadd.f32 %v370, %v622
      %v625 = vtanh.pop %v624
      %v626 = vsub.f32 1.0, %v614
      %628 = vrot.lane.b32.xlu0 %v625, 96
      %v629 = vpop.permute.xlu0 %628
      %v631 = vmul.f32 %v626, %v629
      %v632 = vmul.f32 %v614, %v574
      %v633 = vadd.f32 %v631, %v632
      %v634 = vpack.c.bf16 %v633, %v633
      %636 = vrot.lane.b32.xlu0 %v634, 96
      %v637 = vpop.permute.xlu0 %636
      %v639 = vsel %vm340, %v637, 0
      %641 = vmatpush.bf16.msra.mxu0 0
      %642 = vmatpush.bf16.msra.mxu0 0
      %643 = vmatpush.bf16.msra.mxu0 0
      %644 = vmatpush.bf16.msra.mxu0 0
      %645 = vmatpush.bf16.msra.mxu0 0
      %646 = vmatpush.bf16.msra.mxu0 0
      %647 = vmatpush.bf16.msra.mxu0 %v399
      %648 = vmatpush.bf16.msra.mxu0 %v398
      %649 = vmatmul.bf16.gmra.mxu0 %v639
      %v650 = vpop.f32.mrf.mxu0
      %v651 = vadd.f32 %v388, %v650
      %v652 = vpop.f32.mrf.mxu0
      %653 = vdwg.mxu0
      %v654 = vadd.f32 %v373, %v651
      %v655 = vxor.u32 %v654, 2147483648
      %v656 = vmul.f32 %v655, 1.442695
      %v657 = vpow.pop %v656
      %v658 = vadd.f32 %v657, 1.0
      %v659 = vrcp.pop %v658
      %v660 = vmul.f32 %v658, %v659
      %v661 = vsub.f32 1.0, %v660
      %v662 = vmul.f32 %v659, %v661
      %v663 = vadd.f32 %v659, %v662
      %vm664 = vweird.f32 %v658
      %vm665 = vweird.f32 %v659
      %vm666 = vmor %vm664, %vm665
      %v667 = vsel %vm666, %v659, %v663
      %v668 = vand.u32 2147483647, %v658
      %vm669 = vcmp.eq.f32.partialorder %v668, 8.507059e+37
      %v670 = vand.u32 %v658, 2147483648
      %v671 = vor.u32 1.1754944e-38, %v670
      %v672 = vsel %vm669, %v671, %v667
      %v673 = vmul.f32 1.0, %v672
      %675 = vrot.lane.b32.xlu0 %v651, 64
      %v676 = vpop.permute.xlu0 %675
      %v678 = vmul.f32 %v673, %v676
      %680 = vrot.lane.b32.xlu0 %v678, 64
      %v681 = vpop.permute.xlu0 %680
      %v683 = vadd.f32 %v373, %v681
      %v684 = vtanh.pop %v683
      %v685 = vsub.f32 1.0, %v673
      %687 = vrot.lane.b32.xlu0 %v684, 96
      %v688 = vpop.permute.xlu0 %687
      %v690 = vmul.f32 %v685, %v688
      %v691 = vmul.f32 %v673, %v633
      %v692 = vadd.f32 %v690, %v691
      %v693 = vpack.c.bf16 %v692, %v692
      %695 = vrot.lane.b32.xlu0 %v693, 96
      %v696 = vpop.permute.xlu0 %695
      %v698 = vsel %vm340, %v696, 0
      %700 = vmatpush.bf16.msra.mxu0 0
      %701 = vmatpush.bf16.msra.mxu0 0
      %702 = vmatpush.bf16.msra.mxu0 0
      %703 = vmatpush.bf16.msra.mxu0 0
      %704 = vmatpush.bf16.msra.mxu0 0
      %705 = vmatpush.bf16.msra.mxu0 0
      %706 = vmatpush.bf16.msra.mxu0 %v399
      %707 = vmatpush.bf16.msra.mxu0 %v398
      %708 = vmatmul.bf16.gmra.mxu0 %v698
      %v709 = vpop.f32.mrf.mxu0
      %v710 = vadd.f32 %v388, %v709
      %v711 = vpop.f32.mrf.mxu0
      %712 = vdwg.mxu0
      %v713 = vadd.f32 %v375, %v710
      %v714 = vxor.u32 %v713, 2147483648
      %v715 = vmul.f32 %v714, 1.442695
      %v716 = vpow.pop %v715
      %v717 = vadd.f32 %v716, 1.0
      %v718 = vrcp.pop %v717
      %v719 = vmul.f32 %v717, %v718
      %v720 = vsub.f32 1.0, %v719
      %v721 = vmul.f32 %v718, %v720
      %v722 = vadd.f32 %v718, %v721
      %vm723 = vweird.f32 %v717
      %vm724 = vweird.f32 %v718
      %vm725 = vmor %vm723, %vm724
      %v726 = vsel %vm725, %v718, %v722
      %v727 = vand.u32 2147483647, %v717
      %vm728 = vcmp.eq.f32.partialorder %v727, 8.507059e+37
      %v729 = vand.u32 %v717, 2147483648
      %v730 = vor.u32 1.1754944e-38, %v729
      %v731 = vsel %vm728, %v730, %v726
      %v732 = vmul.f32 1.0, %v731
      %734 = vrot.lane.b32.xlu0 %v710, 64
      %v735 = vpop.permute.xlu0 %734
      %v737 = vmul.f32 %v732, %v735
      %739 = vrot.lane.b32.xlu0 %v737, 64
      %v740 = vpop.permute.xlu0 %739
      %v742 = vadd.f32 %v375, %v740
      %v743 = vtanh.pop %v742
      %v744 = vsub.f32 1.0, %v732
      %746 = vrot.lane.b32.xlu0 %v743, 96
      %v747 = vpop.permute.xlu0 %746
      %v749 = vmul.f32 %v744, %v747
      %v750 = vmul.f32 %v732, %v692
      %v751 = vadd.f32 %v749, %v750
      %v752 = vpack.c.bf16 %v751, %v751
      %754 = vrot.lane.b32.xlu0 %v752, 96
      %v755 = vpop.permute.xlu0 %754
      %v757 = vsel %vm340, %v755, 0
      %759 = vmatpush.bf16.msra.mxu0 0
      %760 = vmatpush.bf16.msra.mxu0 0
      %761 = vmatpush.bf16.msra.mxu0 0
      %762 = vmatpush.bf16.msra.mxu0 0
      %763 = vmatpush.bf16.msra.mxu0 0
      %764 = vmatpush.bf16.msra.mxu0 0
      %765 = vmatpush.bf16.msra.mxu0 %v399
      %766 = vmatpush.bf16.msra.mxu0 %v398
      %767 = vmatmul.bf16.gmra.mxu0 %v757
      %v768 = vpop.f32.mrf.mxu0
      %v769 = vadd.f32 %v388, %v768
      %v770 = vpop.f32.mrf.mxu0
      %771 = vdwg.mxu0
      %v772 = vadd.f32 %v378, %v769
      %v773 = vxor.u32 %v772, 2147483648
      %v774 = vmul.f32 %v773, 1.442695
      %v775 = vpow.pop %v774
      %v776 = vadd.f32 %v775, 1.0
      %v777 = vrcp.pop %v776
      %v778 = vmul.f32 %v776, %v777
      %v779 = vsub.f32 1.0, %v778
      %v780 = vmul.f32 %v777, %v779
      %v781 = vadd.f32 %v777, %v780
      %vm782 = vweird.f32 %v776
      %vm783 = vweird.f32 %v777
      %vm784 = vmor %vm782, %vm783
      %v785 = vsel %vm784, %v777, %v781
      %v786 = vand.u32 2147483647, %v776
      %vm787 = vcmp.eq.f32.partialorder %v786, 8.507059e+37
      %v788 = vand.u32 %v776, 2147483648
      %v789 = vor.u32 1.1754944e-38, %v788
      %v790 = vsel %vm787, %v789, %v785
      %v791 = vmul.f32 1.0, %v790
      %793 = vrot.lane.b32.xlu0 %v769, 64
      %v794 = vpop.permute.xlu0 %793
      %v796 = vmul.f32 %v791, %v794
      %798 = vrot.lane.b32.xlu0 %v796, 64
      %v799 = vpop.permute.xlu0 %798
      %v801 = vadd.f32 %v378, %v799
      %v802 = vtanh.pop %v801
      %v803 = vsub.f32 1.0, %v791
      %805 = vrot.lane.b32.xlu0 %v802, 96
      %v806 = vpop.permute.xlu0 %805
      %v808 = vmul.f32 %v803, %v806
      %v809 = vmul.f32 %v791, %v751
      %v810 = vadd.f32 %v808, %v809
      %v811 = vpack.c.bf16 %v810, %v810
      %813 = vrot.lane.b32.xlu0 %v811, 96
      %v814 = vpop.permute.xlu0 %813
      %v816 = vsel %vm340, %v814, 0
      %818 = vmatpush.bf16.msra.mxu0 0
      %819 = vmatpush.bf16.msra.mxu0 0
      %820 = vmatpush.bf16.msra.mxu0 0
      %821 = vmatpush.bf16.msra.mxu0 0
      %822 = vmatpush.bf16.msra.mxu0 0
      %823 = vmatpush.bf16.msra.mxu0 0
      %824 = vmatpush.bf16.msra.mxu0 %v399
      %825 = vmatpush.bf16.msra.mxu0 %v398
      %826 = vmatmul.bf16.gmra.mxu0 %v816
      %v827 = vpop.f32.mrf.mxu0
      %v828 = vadd.f32 %v388, %v827
      %v829 = vpop.f32.mrf.mxu0
      %830 = vdwg.mxu0
      %v831 = vadd.f32 %v380, %v828
      %v832 = vxor.u32 %v831, 2147483648
      %v833 = vmul.f32 %v832, 1.442695
      %v834 = vpow.pop %v833
      %v835 = vadd.f32 %v834, 1.0
      %v836 = vrcp.pop %v835
      %v837 = vmul.f32 %v835, %v836
      %v838 = vsub.f32 1.0, %v837
      %v839 = vmul.f32 %v836, %v838
      %v840 = vadd.f32 %v836, %v839
      %vm841 = vweird.f32 %v835
      %vm842 = vweird.f32 %v836
      %vm843 = vmor %vm841, %vm842
      %v844 = vsel %vm843, %v836, %v840
      %v845 = vand.u32 2147483647, %v835
      %vm846 = vcmp.eq.f32.partialorder %v845, 8.507059e+37
      %v847 = vand.u32 %v835, 2147483648
      %v848 = vor.u32 1.1754944e-38, %v847
      %v849 = vsel %vm846, %v848, %v844
      %v850 = vmul.f32 1.0, %v849
      %852 = vrot.lane.b32.xlu0 %v828, 64
      %v853 = vpop.permute.xlu0 %852
      %v855 = vmul.f32 %v850, %v853
      %857 = vrot.lane.b32.xlu0 %v855, 64
      %v858 = vpop.permute.xlu0 %857
      %v860 = vadd.f32 %v380, %v858
      %v861 = vtanh.pop %v860
      %v862 = vsub.f32 1.0, %v850
      %864 = vrot.lane.b32.xlu0 %v861, 96
      %v865 = vpop.permute.xlu0 %864
      %v867 = vmul.f32 %v862, %v865
      %v868 = vmul.f32 %v850, %v810
      %v869 = vadd.f32 %v867, %v868
      %871 = vrot.lane.b32.xlu0 %v869, 96
      %v872 = vpop.permute.xlu0 %871
      %874 = vst.msk [vmem:[%s290] sm:$0xff] %vm340, %v872
      %p875 = scmp.lt.s32.totalorder %s16, 1
      %s876 = scalar_select %p875, %s16, 1
      %s877 = smul.addr %s876, 8
      %s878 = scalar_lea.vmem %s5, %s877
      // Predicated region
      $region41: #{_lambda_.2} parent=39 // pred_check
        %p879 = pneg %p164
      $region42: #{_lambda_.2} parent=39 // pred_check_branch
        %881 = sbr.rel (%p879) target = $region44
      $region43: #{_lambda_.2} parent=39 // pred_region
        _
      $region44: #{_lambda_.2} parent=39 // pred_fallthru
        _
    $region40: #{_lambda_.2} parent=5 // pred_fallthru
      _
    %p882 = scmp.le.s32.totalorder 2, %s11
    // Predicated region
    $region45: #{_lambda_.2} parent=5 // pred_check
      %p883 = pneg %p882
    $region46: #{_lambda_.2} parent=5 // pred_check_branch
      %885 = sbr.rel (%p883) target = $region48
    $region47: #{_lambda_.2} parent=5 // pred_region
      %s886 = ssub.s32 %s11, 2
      // Predicated region
      $region49: #{_lambda_.2} parent=47 // pred_check
        %p887 = pneg %p170
      $region50: #{_lambda_.2} parent=47 // pred_check_branch
        %889 = sbr.rel (%p887) target = $region52
      $region51: #{_lambda_.2} parent=47 // pred_region
        %p890 = scmp.lt.s32.totalorder %s17, 1
        %s891 = scalar_select %p890, %s17, 1
        %s892 = smul.addr %s891, 8
        %s893 = scalar_lea.vmem %s5, %s892
      $region52: #{_lambda_.2} parent=47 // pred_fallthru
        _
    $region48: #{_lambda_.2} parent=5 // pred_fallthru
      _
  $region6: #{_lambda_.2} parent=0 // loop_footer
    %s15 = sadd.s32 1, %s11
  $region7: #{_lambda_.2} parent=0 // loop_footer_branch
    %10 = sbr.rel target = $region3
  $region8: #{_lambda_.2} parent=0 // loop_exit
    _

// kernel: _lambda_.3
$region0: #{_lambda_.3}
  #allocation0 [shape = 'u32[]', space=smem, size = 0x4, offset = 0x4, fixed_abs, tag = 'smem constant byte address 0x4 - core index']
  #allocation1 [shape = 'u32[72,128]{1,0:T(1,128)}', space=vmem, size = 0x9000, scoped, tag = 'internal scratch']
  %s0 = inlined_call_operand.vmem [shape: bf16[56,32], index: 0, kind: input, shape index: {}]
  %s1 = inlined_call_operand.vmem [shape: f32[8,64], index: 1, kind: input, shape index: {}]
  %s2 = inlined_call_operand.vmem [shape: bf16[32,192], index: 2, kind: input, shape index: {}]
  %s3 = inlined_call_operand.vmem [shape: bf16[64,192], index: 3, kind: input, shape index: {}]
  %s4 = inlined_call_operand.vmem [shape: f32[1,192], index: 4, kind: input, shape index: {}]
  %s5 = inlined_call_operand.vmem [shape: f32[1,192], index: 5, kind: input, shape index: {}]
  %s6 = inlined_call_operand.vmem [shape: bf16[64,128], index: 6, kind: input, shape index: {}]
  %s7 = inlined_call_operand.vmem [shape: f32[1,128], index: 7, kind: input, shape index: {}]
  %s8 = inlined_call_operand.vmem [shape: bf16[128,256], index: 8, kind: input, shape index: {}]
  %s9 = inlined_call_operand.vmem [shape: f32[1,256], index: 9, kind: input, shape index: {}]
  %s10 = inlined_call_operand.vmem [shape: bf16[256,128], index: 10, kind: input, shape index: {}]
  %s11 = inlined_call_operand.vmem [shape: f32[1,128], index: 11, kind: input, shape index: {}]
  %s12 = inlined_call_operand.vmem [shape: f32[56,128], index: 12, kind: output, shape index: {}]
  %s13 = sld [smem:[#allocation0]]
  $region58: #{_lambda_.3} parent=0
    _
  %s15 = ssub.s32 1, %s13
  %s16 = scalar_select 0, %s15, %s13
  // Predicated region
  $region2: #{_lambda_.3} parent=0 // pred_check
    _
  $region3: #{_lambda_.3} parent=0 // pred_check_branch
    %18 = sbr.rel (0) target = $region5
  $region4: #{_lambda_.3} parent=0 // pred_region
    _
  $region5: #{_lambda_.3} parent=0 // pred_fallthru
    _
  // Predicated region
  $region6: #{_lambda_.3} parent=0 // pred_check
    _
  $region7: #{_lambda_.3} parent=0 // pred_check_branch
    %20 = sbr.rel (0) target = $region9
  $region8: #{_lambda_.3} parent=0 // pred_region
    _
  $region9: #{_lambda_.3} parent=0 // pred_fallthru
    _
  // Predicated region
  $region10: #{_lambda_.3} parent=0 // pred_check
    _
  $region11: #{_lambda_.3} parent=0 // pred_check_branch
    %22 = sbr.rel (0) target = $region13
  $region12: #{_lambda_.3} parent=0 // pred_region
    _
  $region13: #{_lambda_.3} parent=0 // pred_fallthru
    _
  // Predicated region
  $region14: #{_lambda_.3} parent=0 // pred_check
    _
  $region15: #{_lambda_.3} parent=0 // pred_check_branch
    %24 = sbr.rel (0) target = $region17
  $region16: #{_lambda_.3} parent=0 // pred_region
    _
  $region17: #{_lambda_.3} parent=0 // pred_fallthru
    _
  // Predicated region
  $region18: #{_lambda_.3} parent=0 // pred_check
    _
  $region19: #{_lambda_.3} parent=0 // pred_check_branch
    %26 = sbr.rel (0) target = $region21
  $region20: #{_lambda_.3} parent=0 // pred_region
    _
  $region21: #{_lambda_.3} parent=0 // pred_fallthru
    _
  // Predicated region
  $region22: #{_lambda_.3} parent=0 // pred_check
    _
  $region23: #{_lambda_.3} parent=0 // pred_check_branch
    %28 = sbr.rel (0) target = $region25
  $region24: #{_lambda_.3} parent=0 // pred_region
    _
  $region25: #{_lambda_.3} parent=0 // pred_fallthru
    _
  // Predicated region
  $region26: #{_lambda_.3} parent=0 // pred_check
    _
  $region27: #{_lambda_.3} parent=0 // pred_check_branch
    %30 = sbr.rel (0) target = $region29
  $region28: #{_lambda_.3} parent=0 // pred_region
    _
  $region29: #{_lambda_.3} parent=0 // pred_fallthru
    _
  // Predicated region
  $region30: #{_lambda_.3} parent=0 // pred_check
    _
  $region31: #{_lambda_.3} parent=0 // pred_check_branch
    %32 = sbr.rel (0) target = $region33
  $region32: #{_lambda_.3} parent=0 // pred_region
    _
  $region33: #{_lambda_.3} parent=0 // pred_fallthru
    _
  // Predicated region
  $region34: #{_lambda_.3} parent=0 // pred_check
    _
  $region35: #{_lambda_.3} parent=0 // pred_check_branch
    %34 = sbr.rel (0) target = $region37
  $region36: #{_lambda_.3} parent=0 // pred_region
    _
  $region37: #{_lambda_.3} parent=0 // pred_fallthru
    _
  // Predicated region
  $region38: #{_lambda_.3} parent=0 // pred_check
    _
  $region39: #{_lambda_.3} parent=0 // pred_check_branch
    %36 = sbr.rel (0) target = $region41
  $region40: #{_lambda_.3} parent=0 // pred_region
    _
  $region41: #{_lambda_.3} parent=0 // pred_fallthru
    _
  // Predicated region
  $region42: #{_lambda_.3} parent=0 // pred_check
    _
  $region43: #{_lambda_.3} parent=0 // pred_check_branch
    %38 = sbr.rel (0) target = $region45
  $region44: #{_lambda_.3} parent=0 // pred_region
    _
  $region45: #{_lambda_.3} parent=0 // pred_fallthru
    _
  // Predicated region
  $region46: #{_lambda_.3} parent=0 // pred_check
    _
  $region47: #{_lambda_.3} parent=0 // pred_check_branch
    %40 = sbr.rel (0) target = $region49
  $region48: #{_lambda_.3} parent=0 // pred_region
    _
  $region49: #{_lambda_.3} parent=0 // pred_fallthru
    _
  %v42 = vld [vmem:[%s0] sm:$0xf]
  %v43 = vld [vmem:[%s0 + $0x4] sm:$0xf]
  %v44 = vld [vmem:[%s0 + $0x8] sm:$0xf]
  %v45 = vld [vmem:[%s0 + $0xc] sm:$0xf]
  %v46 = vld [vmem:[%s0 + $0x10] sm:$0xf]
  %v47 = vld [vmem:[%s0 + $0x14] sm:$0xf]
  %v48 = vld [vmem:[%s0 + $0x18] sm:$0xf]
  %v49 = vld [vmem:[%s2] sm:$0xff]
  %v50 = vld [vmem:[%s2 + $0x8] sm:$0xff]
  %v51 = vld [vmem:[%s2 + $0x10] sm:$0xff]
  %v52 = vld [vmem:[%s2 + $0x18] sm:$0xff]
  %v53 = vld [vmem:[%s4] sm:$0x3]
  %v55 = vperm.slane %v53, 0
  %v56 = vperm.slane %v53, 1
  %v66 = vunpack.c.l.b16 %v42
  %v67 = vunpack.c.l.b16 %v43
  %v68 = vunpack.c.l.b16 %v44
  %v69 = vunpack.c.l.b16 %v45
  %v70 = vunpack.c.l.b16 %v46
  %v71 = vunpack.c.l.b16 %v47
  %v72 = vunpack.c.l.b16 %v48
  %v73 = vpack.c.b16 %v67, %v66
  %v74 = vpack.c.b16 %v69, %v68
  %v75 = vpack.c.b16 %v71, %v70
  %v76 = vpack.c.b16 %v72, %v72
  %v81 = vunpack.c.l.b16 %v49
  %v82 = vunpack.c.h.b16 %v49
  %v83 = vunpack.c.l.b16 %v50
  %v84 = vunpack.c.h.b16 %v50
  %v85 = vunpack.c.l.b16 %v51
  %v86 = vunpack.c.h.b16 %v51
  %v87 = vunpack.c.l.b16 %v52
  %v88 = vunpack.c.h.b16 %v52
  %v89 = vpack.c.b16 %v83, %v81
  %v90 = vpack.c.b16 %v84, %v82
  %v91 = vpack.c.b16 %v87, %v85
  %v92 = vpack.c.b16 %v88, %v86
  %vm97 = vcmask 261120
  %v99 = vsel %vm97, %v73, 0
  %v102 = vsel %vm97, %v74, 0
  %v105 = vsel %vm97, %v75, 0
  %v108 = vsel %vm97, %v76, 0
  %110 = vmatpush.bf16.msra.mxu0 0
  %111 = vmatpush.bf16.msra.mxu0 0
  %112 = vmatpush.bf16.msra.mxu0 0
  %113 = vmatpush.bf16.msra.mxu0 0
  %114 = vmatpush.bf16.msra.mxu0 0
  %115 = vmatpush.bf16.msra.mxu0 0
  %116 = vmatpush.bf16.msra.mxu0 %v91
  %117 = vmatpush.bf16.msra.mxu0 %v89
  %118 = vmatmul.bf16.gmra.mxu0 %v99
  %v119 = vpop.f32.mrf.mxu0
  %v120 = vadd.f32 %v55, %v119
  %v121 = vpop.f32.mrf.mxu0
  %v122 = vadd.f32 %v55, %v121
  %123 = vmatmul.bf16.gmra.mxu0 %v102
  %v124 = vpop.f32.mrf.mxu0
  %v125 = vadd.f32 %v55, %v124
  %v126 = vpop.f32.mrf.mxu0
  %v127 = vadd.f32 %v55, %v126
  %128 = vmatmul.bf16.gmra.mxu0 %v105
  %v129 = vpop.f32.mrf.mxu0
  %v130 = vadd.f32 %v55, %v129
  %v131 = vpop.f32.mrf.mxu0
  %v132 = vadd.f32 %v55, %v131
  %133 = vmatmul.bf16.gmra.mxu0 %v108
  %v134 = vpop.f32.mrf.mxu0
  %v135 = vadd.f32 %v55, %v134
  %v136 = vpop.f32.mrf.mxu0
  %137 = vdwg.mxu0
  %138 = vmatpush.bf16.msra.mxu0 0
  %139 = vmatpush.bf16.msra.mxu0 0
  %140 = vmatpush.bf16.msra.mxu0 0
  %141 = vmatpush.bf16.msra.mxu0 0
  %142 = vmatpush.bf16.msra.mxu0 0
  %143 = vmatpush.bf16.msra.mxu0 0
  %144 = vmatpush.bf16.msra.mxu0 %v92
  %145 = vmatpush.bf16.msra.mxu0 %v90
  %146 = vmatmul.bf16.gmra.mxu0 %v99
  %v147 = vpop.f32.mrf.mxu0
  %v148 = vadd.f32 %v56, %v147
  %v149 = vpop.f32.mrf.mxu0
  %v150 = vadd.f32 %v56, %v149
  %151 = vmatmul.bf16.gmra.mxu0 %v102
  %v152 = vpop.f32.mrf.mxu0
  %v153 = vadd.f32 %v56, %v152
  %v154 = vpop.f32.mrf.mxu0
  %v155 = vadd.f32 %v56, %v154
  %156 = vmatmul.bf16.gmra.mxu0 %v105
  %v157 = vpop.f32.mrf.mxu0
  %v158 = vadd.f32 %v56, %v157
  %v159 = vpop.f32.mrf.mxu0
  %v160 = vadd.f32 %v56, %v159
  %161 = vmatmul.bf16.gmra.mxu0 %v108
  %v162 = vpop.f32.mrf.mxu0
  %v163 = vadd.f32 %v56, %v162
  %v164 = vpop.f32.mrf.mxu0
  %165 = vdwg.mxu0
  %v166 = vld [vmem:[%s3] sm:$0xff]
  %v167 = vld [vmem:[%s3 + $0x8] sm:$0xff]
  %v168 = vld [vmem:[%s3 + $0x10] sm:$0xff]
  %v169 = vld [vmem:[%s3 + $0x18] sm:$0xff]
  %v170 = vld [vmem:[%s3 + $0x20] sm:$0xff]
  %v171 = vld [vmem:[%s3 + $0x28] sm:$0xff]
  %v172 = vld [vmem:[%s3 + $0x30] sm:$0xff]
  %v173 = vld [vmem:[%s3 + $0x38] sm:$0xff]
  %v174 = vld [vmem:[%s5] sm:$0x3]
  %v175 = vld [vmem:[%s1] sm:$0xff]
  %v176 = vpack.c.bf16 %v175, %v175
  %v178 = vperm.slane %v174, 0
  %v179 = vperm.slane %v174, 1
  %v190 = vunpack.c.l.b16 %v166
  %v191 = vunpack.c.h.b16 %v166
  %v192 = vunpack.c.l.b16 %v167
  %v193 = vunpack.c.h.b16 %v167
  %v194 = vunpack.c.l.b16 %v168
  %v195 = vunpack.c.h.b16 %v168
  %v196 = vunpack.c.l.b16 %v169
  %v197 = vunpack.c.h.b16 %v169
  %v198 = vunpack.c.l.b16 %v170
  %v199 = vunpack.c.h.b16 %v170
  %v200 = vunpack.c.l.b16 %v171
  %v201 = vunpack.c.h.b16 %v171
  %v202 = vunpack.c.l.b16 %v172
  %v203 = vunpack.c.h.b16 %v172
  %v204 = vunpack.c.l.b16 %v173
  %v205 = vunpack.c.h.b16 %v173
  %v206 = vpack.c.b16 %v192, %v190
  %v207 = vpack.c.b16 %v193, %v191
  %v208 = vpack.c.b16 %v196, %v194
  %v209 = vpack.c.b16 %v197, %v195
  %v210 = vpack.c.b16 %v200, %v198
  %v211 = vpack.c.b16 %v201, %v199
  %v212 = vpack.c.b16 %v204, %v202
  %v213 = vpack.c.b16 %v205, %v203
  %vm222 = vcmask 523264
  %v224 = vsel %vm222, %v176, 0
  %226 = vmatpush.bf16.msra.mxu0 0
  %227 = vmatpush.bf16.msra.mxu0 0
  %228 = vmatpush.bf16.msra.mxu0 0
  %229 = vmatpush.bf16.msra.mxu0 0
  %230 = vmatpush.bf16.msra.mxu0 %v212
  %231 = vmatpush.bf16.msra.mxu0 %v210
  %232 = vmatpush.bf16.msra.mxu0 %v208
  %233 = vmatpush.bf16.msra.mxu0 %v206
  %234 = vmatmul.bf16.gmra.mxu0 %v224
  %v235 = vpop.f32.mrf.mxu0
  %v236 = vadd.f32 %v178, %v235
  %v237 = vpop.f32.mrf.mxu0
  %238 = vdwg.mxu0
  %239 = vmatpush.bf16.msra.mxu0 0
  %240 = vmatpush.bf16.msra.mxu0 0
  %241 = vmatpush.bf16.msra.mxu0 0
  %242 = vmatpush.bf16.msra.mxu0 0
  %243 = vmatpush.bf16.msra.mxu0 %v213
  %244 = vmatpush.bf16.msra.mxu0 %v211
  %245 = vmatpush.bf16.msra.mxu0 %v209
  %246 = vmatpush.bf16.msra.mxu0 %v207
  %247 = vmatmul.bf16.gmra.mxu0 %v224
  %v248 = vpop.f32.mrf.mxu0
  %v249 = vadd.f32 %v179, %v248
  %v250 = vpop.f32.mrf.mxu0
  %251 = vdwg.mxu0
  %v252 = vadd.f32 %v120, %v236
  %v253 = vxor.u32 %v252, 2147483648
  %v254 = vmul.f32 %v253, 1.442695
  %v255 = vpow.pop %v254
  %v256 = vadd.f32 %v255, 1.0
  %v257 = vrcp.pop %v256
  %v258 = vmul.f32 %v256, %v257
  %v259 = vsub.f32 1.0, %v258
  %v260 = vmul.f32 %v257, %v259
  %v261 = vadd.f32 %v257, %v260
  %vm262 = vweird.f32 %v256
  %vm263 = vweird.f32 %v257
  %vm264 = vmor %vm262, %vm263
  %v265 = vsel %vm264, %v257, %v261
  %v266 = vand.u32 2147483647, %v256
  %vm267 = vcmp.eq.f32.partialorder %v266, 8.507059e+37
  %v268 = vand.u32 %v256, 2147483648
  %v269 = vor.u32 1.1754944e-38, %v268
  %v270 = vsel %vm267, %v269, %v265
  %v271 = vmul.f32 1.0, %v270
  %v272 = vmul.f32 %v271, %v249
  %v273 = vadd.f32 %v148, %v272
  %v274 = vtanh.pop %v273
  %v275 = vsub.f32 1.0, %v271
  %277 = vrot.lane.b32.xlu0 %v274, 64
  %v278 = vpop.permute.xlu0 %277
  %v280 = vmul.f32 %v275, %v278
  %282 = vrot.lane.b32.xlu0 %v175, 64
  %v283 = vpop.permute.xlu0 %282
  %v285 = vmul.f32 %v271, %v283
  %v286 = vadd.f32 %v280, %v285
  %v287 = vpack.c.bf16 %v286, %v286
  %289 = vrot.lane.b32.xlu0 %v287, 64
  %v290 = vpop.permute.xlu0 %289
  %v292 = vsel %vm222, %v290, 0
  %294 = vmatpush.bf16.msra.mxu0 0
  %295 = vmatpush.bf16.msra.mxu0 0
  %296 = vmatpush.bf16.msra.mxu0 0
  %297 = vmatpush.bf16.msra.mxu0 0
  %298 = vmatpush.bf16.msra.mxu0 %v212
  %299 = vmatpush.bf16.msra.mxu0 %v210
  %300 = vmatpush.bf16.msra.mxu0 %v208
  %301 = vmatpush.bf16.msra.mxu0 %v206
  %302 = vmatmul.bf16.gmra.mxu0 %v292
  %v303 = vpop.f32.mrf.mxu0
  %v304 = vadd.f32 %v178, %v303
  %v305 = vpop.f32.mrf.mxu0
  %306 = vdwg.mxu0
  %307 = vmatpush.bf16.msra.mxu0 0
  %308 = vmatpush.bf16.msra.mxu0 0
  %309 = vmatpush.bf16.msra.mxu0 0
  %310 = vmatpush.bf16.msra.mxu0 0
  %311 = vmatpush.bf16.msra.mxu0 %v213
  %312 = vmatpush.bf16.msra.mxu0 %v211
  %313 = vmatpush.bf16.msra.mxu0 %v209
  %314 = vmatpush.bf16.msra.mxu0 %v207
  %315 = vmatmul.bf16.gmra.mxu0 %v292
  %v316 = vpop.f32.mrf.mxu0
  %v317 = vadd.f32 %v179, %v316
  %v318 = vpop.f32.mrf.mxu0
  %319 = vdwg.mxu0
  %v320 = vadd.f32 %v122, %v304
  %v321 = vxor.u32 %v320, 2147483648
  %v322 = vmul.f32 %v321, 1.442695
  %v323 = vpow.pop %v322
  %v324 = vadd.f32 %v323, 1.0
  %v325 = vrcp.pop %v324
  %v326 = vmul.f32 %v324, %v325
  %v327 = vsub.f32 1.0, %v326
  %v328 = vmul.f32 %v325, %v327
  %v329 = vadd.f32 %v325, %v328
  %vm330 = vweird.f32 %v324
  %vm331 = vweird.f32 %v325
  %vm332 = vmor %vm330, %vm331
  %v333 = vsel %vm332, %v325, %v329
  %v334 = vand.u32 2147483647, %v324
  %vm335 = vcmp.eq.f32.partialorder %v334, 8.507059e+37
  %v336 = vand.u32 %v324, 2147483648
  %v337 = vor.u32 1.1754944e-38, %v336
  %v338 = vsel %vm335, %v337, %v333
  %v339 = vmul.f32 1.0, %v338
  %v340 = vmul.f32 %v339, %v317
  %v341 = vadd.f32 %v150, %v340
  %v342 = vtanh.pop %v341
  %v343 = vsub.f32 1.0, %v339
  %345 = vrot.lane.b32.xlu0 %v342, 64
  %v346 = vpop.permute.xlu0 %345
  %v348 = vmul.f32 %v343, %v346
  %v349 = vmul.f32 %v339, %v286
  %v350 = vadd.f32 %v348, %v349
  %v351 = vpack.c.bf16 %v350, %v350
  %353 = vrot.lane.b32.xlu0 %v351, 64
  %v354 = vpop.permute.xlu0 %353
  %v356 = vsel %vm222, %v354, 0
  %358 = vmatpush.bf16.msra.mxu0 0
  %359 = vmatpush.bf16.msra.mxu0 0
  %360 = vmatpush.bf16.msra.mxu0 0
  %361 = vmatpush.bf16.msra.mxu0 0
  %362 = vmatpush.bf16.msra.mxu0 %v212
  %363 = vmatpush.bf16.msra.mxu0 %v210
  %364 = vmatpush.bf16.msra.mxu0 %v208
  %365 = vmatpush.bf16.msra.mxu0 %v206
  %366 = vmatmul.bf16.gmra.mxu0 %v356
  %v367 = vpop.f32.mrf.mxu0
  %v368 = vadd.f32 %v178, %v367
  %v369 = vpop.f32.mrf.mxu0
  %370 = vdwg.mxu0
  %371 = vmatpush.bf16.msra.mxu0 0
  %372 = vmatpush.bf16.msra.mxu0 0
  %373 = vmatpush.bf16.msra.mxu0 0
  %374 = vmatpush.bf16.msra.mxu0 0
  %375 = vmatpush.bf16.msra.mxu0 %v213
  %376 = vmatpush.bf16.msra.mxu0 %v211
  %377 = vmatpush.bf16.msra.mxu0 %v209
  %378 = vmatpush.bf16.msra.mxu0 %v207
  %379 = vmatmul.bf16.gmra.mxu0 %v356
  %v380 = vpop.f32.mrf.mxu0
  %v381 = vadd.f32 %v179, %v380
  %v382 = vpop.f32.mrf.mxu0
  %383 = vdwg.mxu0
  %v384 = vadd.f32 %v125, %v368
  %v385 = vxor.u32 %v384, 2147483648
  %v386 = vmul.f32 %v385, 1.442695
  %v387 = vpow.pop %v386
  %v388 = vadd.f32 %v387, 1.0
  %v389 = vrcp.pop %v388
  %v390 = vmul.f32 %v388, %v389
  %v391 = vsub.f32 1.0, %v390
  %v392 = vmul.f32 %v389, %v391
  %v393 = vadd.f32 %v389, %v392
  %vm394 = vweird.f32 %v388
  %vm395 = vweird.f32 %v389
  %vm396 = vmor %vm394, %vm395
  %v397 = vsel %vm396, %v389, %v393
  %v398 = vand.u32 2147483647, %v388
  %vm399 = vcmp.eq.f32.partialorder %v398, 8.507059e+37
  %v400 = vand.u32 %v388, 2147483648
  %v401 = vor.u32 1.1754944e-38, %v400
  %v402 = vsel %vm399, %v401, %v397
  %v403 = vmul.f32 1.0, %v402
  %v404 = vmul.f32 %v403, %v381
  %v405 = vadd.f32 %v153, %v404
  %v406 = vtanh.pop %v405
  %v407 = vsub.f32 1.0, %v403
  %409 = vrot.lane.b32.xlu0 %v406, 64
  %v410 = vpop.permute.xlu0 %409
  %v412 = vmul.f32 %v407, %v410
  %v413 = vmul.f32 %v403, %v350
  %v414 = vadd.f32 %v412, %v413
  %v415 = vpack.c.bf16 %v414, %v414
  %417 = vrot.lane.b32.xlu0 %v415, 64
  %v418 = vpop.permute.xlu0 %417
  %v420 = vsel %vm222, %v418, 0
  %422 = vmatpush.bf16.msra.mxu0 0
  %423 = vmatpush.bf16.msra.mxu0 0
  %424 = vmatpush.bf16.msra.mxu0 0
  %425 = vmatpush.bf16.msra.mxu0 0
  %426 = vmatpush.bf16.msra.mxu0 %v212
  %427 = vmatpush.bf16.msra.mxu0 %v210
  %428 = vmatpush.bf16.msra.mxu0 %v208
  %429 = vmatpush.bf16.msra.mxu0 %v206
  %430 = vmatmul.bf16.gmra.mxu0 %v420
  %v431 = vpop.f32.mrf.mxu0
  %v432 = vadd.f32 %v178, %v431
  %v433 = vpop.f32.mrf.mxu0
  %434 = vdwg.mxu0
  %435 = vmatpush.bf16.msra.mxu0 0
  %436 = vmatpush.bf16.msra.mxu0 0
  %437 = vmatpush.bf16.msra.mxu0 0
  %438 = vmatpush.bf16.msra.mxu0 0
  %439 = vmatpush.bf16.msra.mxu0 %v213
  %440 = vmatpush.bf16.msra.mxu0 %v211
  %441 = vmatpush.bf16.msra.mxu0 %v209
  %442 = vmatpush.bf16.msra.mxu0 %v207
  %443 = vmatmul.bf16.gmra.mxu0 %v420
  %v444 = vpop.f32.mrf.mxu0
  %v445 = vadd.f32 %v179, %v444
  %v446 = vpop.f32.mrf.mxu0
  %447 = vdwg.mxu0
  %v448 = vadd.f32 %v127, %v432
  %v449 = vxor.u32 %v448, 2147483648
  %v450 = vmul.f32 %v449, 1.442695
  %v451 = vpow.pop %v450
  %v452 = vadd.f32 %v451, 1.0
  %v453 = vrcp.pop %v452
  %v454 = vmul.f32 %v452, %v453
  %v455 = vsub.f32 1.0, %v454
  %v456 = vmul.f32 %v453, %v455
  %v457 = vadd.f32 %v453, %v456
  %vm458 = vweird.f32 %v452
  %vm459 = vweird.f32 %v453
  %vm460 = vmor %vm458, %vm459
  %v461 = vsel %vm460, %v453, %v457
  %v462 = vand.u32 2147483647, %v452
  %vm463 = vcmp.eq.f32.partialorder %v462, 8.507059e+37
  %v464 = vand.u32 %v452, 2147483648
  %v465 = vor.u32 1.1754944e-38, %v464
  %v466 = vsel %vm463, %v465, %v461
  %v467 = vmul.f32 1.0, %v466
  %v468 = vmul.f32 %v467, %v445
  %v469 = vadd.f32 %v155, %v468
  %v470 = vtanh.pop %v469
  %v471 = vsub.f32 1.0, %v467
  %473 = vrot.lane.b32.xlu0 %v470, 64
  %v474 = vpop.permute.xlu0 %473
  %v476 = vmul.f32 %v471, %v474
  %v477 = vmul.f32 %v467, %v414
  %v478 = vadd.f32 %v476, %v477
  %v479 = vpack.c.bf16 %v478, %v478
  %481 = vrot.lane.b32.xlu0 %v479, 64
  %v482 = vpop.permute.xlu0 %481
  %v484 = vsel %vm222, %v482, 0
  %486 = vmatpush.bf16.msra.mxu0 0
  %487 = vmatpush.bf16.msra.mxu0 0
  %488 = vmatpush.bf16.msra.mxu0 0
  %489 = vmatpush.bf16.msra.mxu0 0
  %490 = vmatpush.bf16.msra.mxu0 %v212
  %491 = vmatpush.bf16.msra.mxu0 %v210
  %492 = vmatpush.bf16.msra.mxu0 %v208
  %493 = vmatpush.bf16.msra.mxu0 %v206
  %494 = vmatmul.bf16.gmra.mxu0 %v484
  %v495 = vpop.f32.mrf.mxu0
  %v496 = vadd.f32 %v178, %v495
  %v497 = vpop.f32.mrf.mxu0
  %498 = vdwg.mxu0
  %499 = vmatpush.bf16.msra.mxu0 0
  %500 = vmatpush.bf16.msra.mxu0 0
  %501 = vmatpush.bf16.msra.mxu0 0
  %502 = vmatpush.bf16.msra.mxu0 0
  %503 = vmatpush.bf16.msra.mxu0 %v213
  %504 = vmatpush.bf16.msra.mxu0 %v211
  %505 = vmatpush.bf16.msra.mxu0 %v209
  %506 = vmatpush.bf16.msra.mxu0 %v207
  %507 = vmatmul.bf16.gmra.mxu0 %v484
  %v508 = vpop.f32.mrf.mxu0
  %v509 = vadd.f32 %v179, %v508
  %v510 = vpop.f32.mrf.mxu0
  %511 = vdwg.mxu0
  %v512 = vadd.f32 %v130, %v496
  %v513 = vxor.u32 %v512, 2147483648
  %v514 = vmul.f32 %v513, 1.442695
  %v515 = vpow.pop %v514
  %v516 = vadd.f32 %v515, 1.0
  %v517 = vrcp.pop %v516
  %v518 = vmul.f32 %v516, %v517
  %v519 = vsub.f32 1.0, %v518
  %v520 = vmul.f32 %v517, %v519
  %v521 = vadd.f32 %v517, %v520
  %vm522 = vweird.f32 %v516
  %vm523 = vweird.f32 %v517
  %vm524 = vmor %vm522, %vm523
  %v525 = vsel %vm524, %v517, %v521
  %v526 = vand.u32 2147483647, %v516
  %vm527 = vcmp.eq.f32.partialorder %v526, 8.507059e+37
  %v528 = vand.u32 %v516, 2147483648
  %v529 = vor.u32 1.1754944e-38, %v528
  %v530 = vsel %vm527, %v529, %v525
  %v531 = vmul.f32 1.0, %v530
  %v532 = vmul.f32 %v531, %v509
  %v533 = vadd.f32 %v158, %v532
  %v534 = vtanh.pop %v533
  %v535 = vsub.f32 1.0, %v531
  %537 = vrot.lane.b32.xlu0 %v534, 64
  %v538 = vpop.permute.xlu0 %537
  %v540 = vmul.f32 %v535, %v538
  %v541 = vmul.f32 %v531, %v478
  %v542 = vadd.f32 %v540, %v541
  %v543 = vpack.c.bf16 %v542, %v542
  %545 = vrot.lane.b32.xlu0 %v543, 64
  %v546 = vpop.permute.xlu0 %545
  %v548 = vsel %vm222, %v546, 0
  %550 = vmatpush.bf16.msra.mxu0 0
  %551 = vmatpush.bf16.msra.mxu0 0
  %552 = vmatpush.bf16.msra.mxu0 0
  %553 = vmatpush.bf16.msra.mxu0 0
  %554 = vmatpush.bf16.msra.mxu0 %v212
  %555 = vmatpush.bf16.msra.mxu0 %v210
  %556 = vmatpush.bf16.msra.mxu0 %v208
  %557 = vmatpush.bf16.msra.mxu0 %v206
  %558 = vmatmul.bf16.gmra.mxu0 %v548
  %v559 = vpop.f32.mrf.mxu0
  %v560 = vadd.f32 %v178, %v559
  %v561 = vpop.f32.mrf.mxu0
  %562 = vdwg.mxu0
  %563 = vmatpush.bf16.msra.mxu0 0
  %564 = vmatpush.bf16.msra.mxu0 0
  %565 = vmatpush.bf16.msra.mxu0 0
  %566 = vmatpush.bf16.msra.mxu0 0
  %567 = vmatpush.bf16.msra.mxu0 %v213
  %568 = vmatpush.bf16.msra.mxu0 %v211
  %569 = vmatpush.bf16.msra.mxu0 %v209
  %570 = vmatpush.bf16.msra.mxu0 %v207
  %571 = vmatmul.bf16.gmra.mxu0 %v548
  %v572 = vpop.f32.mrf.mxu0
  %v573 = vadd.f32 %v179, %v572
  %v574 = vpop.f32.mrf.mxu0
  %575 = vdwg.mxu0
  %v576 = vadd.f32 %v132, %v560
  %v577 = vxor.u32 %v576, 2147483648
  %v578 = vmul.f32 %v577, 1.442695
  %v579 = vpow.pop %v578
  %v580 = vadd.f32 %v579, 1.0
  %v581 = vrcp.pop %v580
  %v582 = vmul.f32 %v580, %v581
  %v583 = vsub.f32 1.0, %v582
  %v584 = vmul.f32 %v581, %v583
  %v585 = vadd.f32 %v581, %v584
  %vm586 = vweird.f32 %v580
  %vm587 = vweird.f32 %v581
  %vm588 = vmor %vm586, %vm587
  %v589 = vsel %vm588, %v581, %v585
  %v590 = vand.u32 2147483647, %v580
  %vm591 = vcmp.eq.f32.partialorder %v590, 8.507059e+37
  %v592 = vand.u32 %v580, 2147483648
  %v593 = vor.u32 1.1754944e-38, %v592
  %v594 = vsel %vm591, %v593, %v589
  %v595 = vmul.f32 1.0, %v594
  %v596 = vmul.f32 %v595, %v573
  %v597 = vadd.f32 %v160, %v596
  %v598 = vtanh.pop %v597
  %v599 = vsub.f32 1.0, %v595
  %601 = vrot.lane.b32.xlu0 %v598, 64
  %v602 = vpop.permute.xlu0 %601
  %v604 = vmul.f32 %v599, %v602
  %v605 = vmul.f32 %v595, %v542
  %v606 = vadd.f32 %v604, %v605
  %v607 = vpack.c.bf16 %v606, %v606
  %609 = vrot.lane.b32.xlu0 %v607, 64
  %v610 = vpop.permute.xlu0 %609
  %v612 = vsel %vm222, %v610, 0
  %614 = vmatpush.bf16.msra.mxu0 0
  %615 = vmatpush.bf16.msra.mxu0 0
  %616 = vmatpush.bf16.msra.mxu0 0
  %617 = vmatpush.bf16.msra.mxu0 0
  %618 = vmatpush.bf16.msra.mxu0 %v212
  %619 = vmatpush.bf16.msra.mxu0 %v210
  %620 = vmatpush.bf16.msra.mxu0 %v208
  %621 = vmatpush.bf16.msra.mxu0 %v206
  %622 = vmatmul.bf16.gmra.mxu0 %v612
  %v623 = vpop.f32.mrf.mxu0
  %v624 = vadd.f32 %v178, %v623
  %v625 = vpop.f32.mrf.mxu0
  %626 = vdwg.mxu0
  %627 = vmatpush.bf16.msra.mxu0 0
  %628 = vmatpush.bf16.msra.mxu0 0
  %629 = vmatpush.bf16.msra.mxu0 0
  %630 = vmatpush.bf16.msra.mxu0 0
  %631 = vmatpush.bf16.msra.mxu0 %v213
  %632 = vmatpush.bf16.msra.mxu0 %v211
  %633 = vmatpush.bf16.msra.mxu0 %v209
  %634 = vmatpush.bf16.msra.mxu0 %v207
  %635 = vmatmul.bf16.gmra.mxu0 %v612
  %v636 = vpop.f32.mrf.mxu0
  %v637 = vadd.f32 %v179, %v636
  %v638 = vpop.f32.mrf.mxu0
  %639 = vdwg.mxu0
  %v640 = vadd.f32 %v135, %v624
  %v641 = vxor.u32 %v640, 2147483648
  %v642 = vmul.f32 %v641, 1.442695
  %v643 = vpow.pop %v642
  %v644 = vadd.f32 %v643, 1.0
  %v645 = vrcp.pop %v644
  %v646 = vmul.f32 %v644, %v645
  %v647 = vsub.f32 1.0, %v646
  %v648 = vmul.f32 %v645, %v647
  %v649 = vadd.f32 %v645, %v648
  %vm650 = vweird.f32 %v644
  %vm651 = vweird.f32 %v645
  %vm652 = vmor %vm650, %vm651
  %v653 = vsel %vm652, %v645, %v649
  %v654 = vand.u32 2147483647, %v644
  %vm655 = vcmp.eq.f32.partialorder %v654, 8.507059e+37
  %v656 = vand.u32 %v644, 2147483648
  %v657 = vor.u32 1.1754944e-38, %v656
  %v658 = vsel %vm655, %v657, %v653
  %v659 = vmul.f32 1.0, %v658
  %v660 = vmul.f32 %v659, %v637
  %v661 = vadd.f32 %v163, %v660
  %v662 = vtanh.pop %v661
  %v663 = vsub.f32 1.0, %v659
  %665 = vrot.lane.b32.xlu0 %v662, 64
  %v666 = vpop.permute.xlu0 %665
  %v668 = vmul.f32 %v663, %v666
  %v669 = vmul.f32 %v659, %v606
  %v670 = vadd.f32 %v668, %v669
  %v671 = vpack.c.bf16 %v350, %v286
  %v672 = vpack.c.bf16 %v478, %v414
  %v673 = vpack.c.bf16 %v606, %v542
  %v674 = vpack.c.bf16 %v670, %v670
  %v675 = vld [vmem:[%s6] sm:$0xf]
  %v676 = vld [vmem:[%s6 + $0x4] sm:$0xf]
  %v677 = vld [vmem:[%s6 + $0x8] sm:$0xf]
  %v678 = vld [vmem:[%s6 + $0xc] sm:$0xf]
  %v679 = vld [vmem:[%s6 + $0x10] sm:$0xf]
  %v680 = vld [vmem:[%s6 + $0x14] sm:$0xf]
  %v681 = vld [vmem:[%s6 + $0x18] sm:$0xf]
  %v682 = vld [vmem:[%s6 + $0x1c] sm:$0xf]
  %v683 = vld [vmem:[%s7] sm:$0x1]
  %v685 = vperm.slane %v683, 0
  %691 = vrot.lane.b32.xlu0 %v671, 64
  %v692 = vpop.permute.xlu0 %691
  %693 = vrot.lane.b32.xlu0 %v672, 64
  %v694 = vpop.permute.xlu0 %693
  %695 = vrot.lane.b32.xlu0 %v673, 64
  %v696 = vpop.permute.xlu0 %695
  %697 = vrot.lane.b32.xlu0 %v674, 64
  %v698 = vpop.permute.xlu0 %697
  %v707 = vunpack.c.l.b16 %v675
  %v708 = vunpack.c.l.b16 %v676
  %v709 = vunpack.c.l.b16 %v677
  %v710 = vunpack.c.l.b16 %v678
  %v711 = vunpack.c.l.b16 %v679
  %v712 = vunpack.c.l.b16 %v680
  %v713 = vunpack.c.l.b16 %v681
  %v714 = vunpack.c.l.b16 %v682
  %v715 = vpack.c.b16 %v708, %v707
  %v716 = vpack.c.b16 %v710, %v709
  %v717 = vpack.c.b16 %v712, %v711
  %v718 = vpack.c.b16 %v714, %v713
  %v724 = vsel %vm222, %v692, 0
  %v727 = vsel %vm222, %v694, 0
  %v730 = vsel %vm222, %v696, 0
  %v733 = vsel %vm222, %v698, 0
  %735 = vmatpush.bf16.msra.mxu0 0
  %736 = vmatpush.bf16.msra.mxu0 0
  %737 = vmatpush.bf16.msra.mxu0 0
  %738 = vmatpush.bf16.msra.mxu0 0
  %739 = vmatpush.bf16.msra.mxu0 %v718
  %740 = vmatpush.bf16.msra.mxu0 %v717
  %741 = vmatpush.bf16.msra.mxu0 %v716
  %742 = vmatpush.bf16.msra.mxu0 %v715
  %743 = vmatmul.bf16.gmra.mxu0 %v724
  %v744 = vpop.f32.mrf.mxu0
  %v745 = vadd.f32 %v685, %v744
  %v746 = vpop.f32.mrf.mxu0
  %v747 = vadd.f32 %v685, %v746
  %748 = vmatmul.bf16.gmra.mxu0 %v727
  %v749 = vpop.f32.mrf.mxu0
  %v750 = vadd.f32 %v685, %v749
  %v751 = vpop.f32.mrf.mxu0
  %v752 = vadd.f32 %v685, %v751
  %753 = vmatmul.bf16.gmra.mxu0 %v730
  %v754 = vpop.f32.mrf.mxu0
  %v755 = vadd.f32 %v685, %v754
  %v756 = vpop.f32.mrf.mxu0
  %v757 = vadd.f32 %v685, %v756
  %758 = vmatmul.bf16.gmra.mxu0 %v733
  %v759 = vpop.f32.mrf.mxu0
  %v760 = vadd.f32 %v685, %v759
  %v761 = vpop.f32.mrf.mxu0
  %762 = vdwg.mxu0
  %v763 = vpack.c.bf16 %v747, %v745
  %v764 = vpack.c.bf16 %v752, %v750
  %v765 = vpack.c.bf16 %v757, %v755
  %v766 = vpack.c.bf16 %v760, %v760
  %v767 = vld [vmem:[%s8] sm:$0xff]
  %v768 = vld [vmem:[%s8 + $0x8] sm:$0xff]
  %v769 = vld [vmem:[%s8 + $0x10] sm:$0xff]
  %v770 = vld [vmem:[%s8 + $0x18] sm:$0xff]
  %v771 = vld [vmem:[%s8 + $0x20] sm:$0xff]
  %v772 = vld [vmem:[%s8 + $0x28] sm:$0xff]
  %v773 = vld [vmem:[%s8 + $0x30] sm:$0xff]
  %v774 = vld [vmem:[%s8 + $0x38] sm:$0xff]
  %v775 = vld [vmem:[%s8 + $0x40] sm:$0xff]
  %v776 = vld [vmem:[%s8 + $0x48] sm:$0xff]
  %v777 = vld [vmem:[%s8 + $0x50] sm:$0xff]
  %v778 = vld [vmem:[%s8 + $0x58] sm:$0xff]
  %v779 = vld [vmem:[%s8 + $0x60] sm:$0xff]
  %v780 = vld [vmem:[%s8 + $0x68] sm:$0xff]
  %v781 = vld [vmem:[%s8 + $0x70] sm:$0xff]
  %v782 = vld [vmem:[%s8 + $0x78] sm:$0xff]
  %v783 = vld [vmem:[%s9] sm:$0x3]
  %v785 = vperm.slane %v783, 0
  %v786 = vperm.slane %v783, 1
  %v805 = vunpack.c.l.b16 %v767
  %v806 = vunpack.c.h.b16 %v767
  %v807 = vunpack.c.l.b16 %v768
  %v808 = vunpack.c.h.b16 %v768
  %v809 = vunpack.c.l.b16 %v769
  %v810 = vunpack.c.h.b16 %v769
  %v811 = vunpack.c.l.b16 %v770
  %v812 = vunpack.c.h.b16 %v770
  %v813 = vunpack.c.l.b16 %v771
  %v814 = vunpack.c.h.b16 %v771
  %v815 = vunpack.c.l.b16 %v772
  %v816 = vunpack.c.h.b16 %v772
  %v817 = vunpack.c.l.b16 %v773
  %v818 = vunpack.c.h.b16 %v773
  %v819 = vunpack.c.l.b16 %v774
  %v820 = vunpack.c.h.b16 %v774
  %v821 = vunpack.c.l.b16 %v775
  %v822 = vunpack.c.h.b16 %v775
  %v823 = vunpack.c.l.b16 %v776
  %v824 = vunpack.c.h.b16 %v776
  %v825 = vunpack.c.l.b16 %v777
  %v826 = vunpack.c.h.b16 %v777
  %v827 = vunpack.c.l.b16 %v778
  %v828 = vunpack.c.h.b16 %v778
  %v829 = vunpack.c.l.b16 %v779
  %v830 = vunpack.c.h.b16 %v779
  %v831 = vunpack.c.l.b16 %v780
  %v832 = vunpack.c.h.b16 %v780
  %v833 = vunpack.c.l.b16 %v781
  %v834 = vunpack.c.h.b16 %v781
  %v835 = vunpack.c.l.b16 %v782
  %v836 = vunpack.c.h.b16 %v782
  %v837 = vpack.c.b16 %v807, %v805
  %v838 = vpack.c.b16 %v808, %v806
  %v839 = vpack.c.b16 %v811, %v809
  %v840 = vpack.c.b16 %v812, %v810
  %v841 = vpack.c.b16 %v815, %v813
  %v842 = vpack.c.b16 %v816, %v814
  %v843 = vpack.c.b16 %v819, %v817
  %v844 = vpack.c.b16 %v820, %v818
  %v845 = vpack.c.b16 %v823, %v821
  %v846 = vpack.c.b16 %v824, %v822
  %v847 = vpack.c.b16 %v827, %v825
  %v848 = vpack.c.b16 %v828, %v826
  %v849 = vpack.c.b16 %v831, %v829
  %v850 = vpack.c.b16 %v832, %v830
  %v851 = vpack.c.b16 %v835, %v833
  %v852 = vpack.c.b16 %v836, %v834
  %869 = vmatpush.bf16.msra.mxu0 %v851
  %870 = vmatpush.bf16.msra.mxu0 %v849
  %871 = vmatpush.bf16.msra.mxu0 %v847
  %872 = vmatpush.bf16.msra.mxu0 %v845
  %873 = vmatpush.bf16.msra.mxu0 %v843
  %874 = vmatpush.bf16.msra.mxu0 %v841
  %875 = vmatpush.bf16.msra.mxu0 %v839
  %876 = vmatpush.bf16.msra.mxu0 %v837
  %877 = vmatmul.bf16.gmra.mxu0 %v763
  %v878 = vpop.f32.mrf.mxu0
  %v879 = vadd.f32 %v785, %v878
  %v880 = vpop.f32.mrf.mxu0
  %v881 = vadd.f32 %v785, %v880
  %882 = vmatmul.bf16.gmra.mxu0 %v764
  %v883 = vpop.f32.mrf.mxu0
  %v884 = vadd.f32 %v785, %v883
  %v885 = vpop.f32.mrf.mxu0
  %v886 = vadd.f32 %v785, %v885
  %887 = vmatmul.bf16.gmra.mxu0 %v765
  %v888 = vpop.f32.mrf.mxu0
  %v889 = vadd.f32 %v785, %v888
  %v890 = vpop.f32.mrf.mxu0
  %v891 = vadd.f32 %v785, %v890
  %892 = vmatmul.bf16.gmra.mxu0 %v766
  %v893 = vpop.f32.mrf.mxu0
  %v894 = vadd.f32 %v785, %v893
  %v895 = vpop.f32.mrf.mxu0
  %896 = vdwg.mxu0
  %897 = vmatpush.bf16.msra.mxu0 %v852
  %898 = vmatpush.bf16.msra.mxu0 %v850
  %899 = vmatpush.bf16.msra.mxu0 %v848
  %900 = vmatpush.bf16.msra.mxu0 %v846
  %901 = vmatpush.bf16.msra.mxu0 %v844
  %902 = vmatpush.bf16.msra.mxu0 %v842
  %903 = vmatpush.bf16.msra.mxu0 %v840
  %904 = vmatpush.bf16.msra.mxu0 %v838
  %905 = vmatmul.bf16.gmra.mxu0 %v763
  %v906 = vpop.f32.mrf.mxu0
  %v907 = vadd.f32 %v786, %v906
  %v908 = vpop.f32.mrf.mxu0
  %v909 = vadd.f32 %v786, %v908
  %910 = vmatmul.bf16.gmra.mxu0 %v764
  %v911 = vpop.f32.mrf.mxu0
  %v912 = vadd.f32 %v786, %v911
  %v913 = vpop.f32.mrf.mxu0
  %v914 = vadd.f32 %v786, %v913
  %915 = vmatmul.bf16.gmra.mxu0 %v765
  %v916 = vpop.f32.mrf.mxu0
  %v917 = vadd.f32 %v786, %v916
  %v918 = vpop.f32.mrf.mxu0
  %v919 = vadd.f32 %v786, %v918
  %920 = vmatmul.bf16.gmra.mxu0 %v766
  %v921 = vpop.f32.mrf.mxu0
  %v922 = vadd.f32 %v786, %v921
  %v923 = vpop.f32.mrf.mxu0
  %924 = vdwg.mxu0
  %v925 = vpack.c.bf16 %v881, %v879
  %v926 = vpack.c.bf16 %v909, %v907
  %v927 = vpack.c.bf16 %v886, %v884
  %v928 = vpack.c.bf16 %v914, %v912
  %v929 = vpack.c.bf16 %v891, %v889
  %v930 = vpack.c.bf16 %v919, %v917
  %v931 = vpack.c.bf16 %v894, %v894
  %v932 = vpack.c.bf16 %v922, %v922
  %v933 = vld [vmem:[%s10] sm:$0xf]
  %v934 = vld [vmem:[%s10 + $0x4] sm:$0xf]
  %v935 = vld [vmem:[%s10 + $0x8] sm:$0xf]
  %v936 = vld [vmem:[%s10 + $0xc] sm:$0xf]
  %v937 = vld [vmem:[%s10 + $0x10] sm:$0xf]
  %v938 = vld [vmem:[%s10 + $0x14] sm:$0xf]
  %v939 = vld [vmem:[%s10 + $0x18] sm:$0xf]
  %v940 = vld [vmem:[%s10 + $0x1c] sm:$0xf]
  %v941 = vld [vmem:[%s10 + $0x20] sm:$0xf]
  %v942 = vld [vmem:[%s10 + $0x24] sm:$0xf]
  %v943 = vld [vmem:[%s10 + $0x28] sm:$0xf]
  %v944 = vld [vmem:[%s10 + $0x2c] sm:$0xf]
  %v945 = vld [vmem:[%s10 + $0x30] sm:$0xf]
  %v946 = vld [vmem:[%s10 + $0x34] sm:$0xf]
  %v947 = vld [vmem:[%s10 + $0x38] sm:$0xf]
  %v948 = vld [vmem:[%s10 + $0x3c] sm:$0xf]
  %v949 = vld [vmem:[%s10 + $0x40] sm:$0xf]
  %v950 = vld [vmem:[%s10 + $0x44] sm:$0xf]
  %v951 = vld [vmem:[%s10 + $0x48] sm:$0xf]
  %v952 = vld [vmem:[%s10 + $0x4c] sm:$0xf]
  %v953 = vld [vmem:[%s10 + $0x50] sm:$0xf]
  %v954 = vld [vmem:[%s10 + $0x54] sm:$0xf]
  %v955 = vld [vmem:[%s10 + $0x58] sm:$0xf]
  %v956 = vld [vmem:[%s10 + $0x5c] sm:$0xf]
  %v957 = vld [vmem:[%s10 + $0x60] sm:$0xf]
  %v958 = vld [vmem:[%s10 + $0x64] sm:$0xf]
  %v959 = vld [vmem:[%s10 + $0x68] sm:$0xf]
  %v960 = vld [vmem:[%s10 + $0x6c] sm:$0xf]
  %v961 = vld [vmem:[%s10 + $0x70] sm:$0xf]
  %v962 = vld [vmem:[%s10 + $0x74] sm:$0xf]
  %v963 = vld [vmem:[%s10 + $0x78] sm:$0xf]
  %v964 = vld [vmem:[%s10 + $0x7c] sm:$0xf]
  %v965 = vld [vmem:[%s11] sm:$0x1]
  %v967 = vperm.slane %v965, 0
  %v1001 = vunpack.c.l.b16 %v933
  %v1002 = vunpack.c.l.b16 %v934
  %v1003 = vunpack.c.l.b16 %v935
  %v1004 = vunpack.c.l.b16 %v936
  %v1005 = vunpack.c.l.b16 %v937
  %v1006 = vunpack.c.l.b16 %v938
  %v1007 = vunpack.c.l.b16 %v939
  %v1008 = vunpack.c.l.b16 %v940
  %v1009 = vunpack.c.l.b16 %v941
  %v1010 = vunpack.c.l.b16 %v942
  %v1011 = vunpack.c.l.b16 %v943
  %v1012 = vunpack.c.l.b16 %v944
  %v1013 = vunpack.c.l.b16 %v945
  %v1014 = vunpack.c.l.b16 %v946
  %v1015 = vunpack.c.l.b16 %v947
  %v1016 = vunpack.c.l.b16 %v948
  %v1017 = vunpack.c.l.b16 %v949
  %v1018 = vunpack.c.l.b16 %v950
  %v1019 = vunpack.c.l.b16 %v951
  %v1020 = vunpack.c.l.b16 %v952
  %v1021 = vunpack.c.l.b16 %v953
  %v1022 = vunpack.c.l.b16 %v954
  %v1023 = vunpack.c.l.b16 %v955
  %v1024 = vunpack.c.l.b16 %v956
  %v1025 = vunpack.c.l.b16 %v957
  %v1026 = vunpack.c.l.b16 %v958
  %v1027 = vunpack.c.l.b16 %v959
  %v1028 = vunpack.c.l.b16 %v960
  %v1029 = vunpack.c.l.b16 %v961
  %v1030 = vunpack.c.l.b16 %v962
  %v1031 = vunpack.c.l.b16 %v963
  %v1032 = vunpack.c.l.b16 %v964
  %v1033 = vpack.c.b16 %v1002, %v1001
  %v1034 = vpack.c.b16 %v1004, %v1003
  %v1035 = vpack.c.b16 %v1006, %v1005
  %v1036 = vpack.c.b16 %v1008, %v1007
  %v1037 = vpack.c.b16 %v1010, %v1009
  %v1038 = vpack.c.b16 %v1012, %v1011
  %v1039 = vpack.c.b16 %v1014, %v1013
  %v1040 = vpack.c.b16 %v1016, %v1015
  %v1041 = vpack.c.b16 %v1018, %v1017
  %v1042 = vpack.c.b16 %v1020, %v1019
  %v1043 = vpack.c.b16 %v1022, %v1021
  %v1044 = vpack.c.b16 %v1024, %v1023
  %v1045 = vpack.c.b16 %v1026, %v1025
  %v1046 = vpack.c.b16 %v1028, %v1027
  %v1047 = vpack.c.b16 %v1030, %v1029
  %v1048 = vpack.c.b16 %v1032, %v1031
  %1065 = vmatpush.bf16.msra.mxu0 %v1040
  %1066 = vmatpush.bf16.msra.mxu0 %v1039
  %1067 = vmatpush.bf16.msra.mxu0 %v1038
  %1068 = vmatpush.bf16.msra.mxu0 %v1037
  %1069 = vmatpush.bf16.msra.mxu0 %v1036
  %1070 = vmatpush.bf16.msra.mxu0 %v1035
  %1071 = vmatpush.bf16.msra.mxu0 %v1034
  %1072 = vmatpush.bf16.msra.mxu0 %v1033
  %1073 = vmatmul.bf16.gmra.mxu0 %v925
  %v1074 = vpop.f32.mrf.mxu0
  %v1075 = vadd.f32 %v967, %v1074
  %v1076 = vpop.f32.mrf.mxu0
  %v1077 = vadd.f32 %v967, %v1076
  %1078 = vmatmul.bf16.gmra.mxu0 %v927
  %v1079 = vpop.f32.mrf.mxu0
  %v1080 = vadd.f32 %v967, %v1079
  %v1081 = vpop.f32.mrf.mxu0
  %v1082 = vadd.f32 %v967, %v1081
  %1083 = vmatmul.bf16.gmra.mxu0 %v929
  %v1084 = vpop.f32.mrf.mxu0
  %v1085 = vadd.f32 %v967, %v1084
  %v1086 = vpop.f32.mrf.mxu0
  %v1087 = vadd.f32 %v967, %v1086
  %1088 = vmatmul.bf16.gmra.mxu0 %v931
  %v1089 = vpop.f32.mrf.mxu0
  %v1090 = vadd.f32 %v967, %v1089
  %v1091 = vpop.f32.mrf.mxu0
  %1092 = vdwg.mxu0
  %1093 = vmatpush.bf16.msra.mxu0 %v1048
  %1094 = vmatpush.bf16.msra.mxu0 %v1047
  %1095 = vmatpush.bf16.msra.mxu0 %v1046
  %1096 = vmatpush.bf16.msra.mxu0 %v1045
  %1097 = vmatpush.bf16.msra.mxu0 %v1044
  %1098 = vmatpush.bf16.msra.mxu0 %v1043
  %1099 = vmatpush.bf16.msra.mxu0 %v1042
  %1100 = vmatpush.bf16.msra.mxu0 %v1041
  %1101 = vmatmul.bf16.gmra.mxu0 %v926
  %v1102 = vpop.f32.mrf.mxu0
  %v1103 = vadd.f32 %v1075, %v1102
  %v1104 = vpop.f32.mrf.mxu0
  %v1105 = vadd.f32 %v1077, %v1104
  %1106 = vmatmul.bf16.gmra.mxu0 %v928
  %v1107 = vpop.f32.mrf.mxu0
  %v1108 = vadd.f32 %v1080, %v1107
  %v1109 = vpop.f32.mrf.mxu0
  %v1110 = vadd.f32 %v1082, %v1109
  %1111 = vmatmul.bf16.gmra.mxu0 %v930
  %v1112 = vpop.f32.mrf.mxu0
  %v1113 = vadd.f32 %v1085, %v1112
  %v1114 = vpop.f32.mrf.mxu0
  %v1115 = vadd.f32 %v1087, %v1114
  %1116 = vmatmul.bf16.gmra.mxu0 %v932
  %v1117 = vpop.f32.mrf.mxu0
  %v1118 = vadd.f32 %v1090, %v1117
  %v1119 = vpop.f32.mrf.mxu0
  %1120 = vdwg.mxu0
  %1121 = vst [vmem:[%s12] sm:$0xff] %v1103
  %1122 = vst [vmem:[%s12 + $0x8] sm:$0xff] %v1105
  %1123 = vst [vmem:[%s12 + $0x10] sm:$0xff] %v1108
  %1124 = vst [vmem:[%s12 + $0x18] sm:$0xff] %v1110
  %1125 = vst [vmem:[%s12 + $0x20] sm:$0xff] %v1113
  %1126 = vst [vmem:[%s12 + $0x28] sm:$0xff] %v1115
  %1127 = vst [vmem:[%s12 + $0x30] sm:$0xff] %v1118
  // Predicated region
  $region50: #{_lambda_.3} parent=0 // pred_check
    _
  $region51: #{_lambda_.3} parent=0 // pred_check_branch
    %1129 = sbr.rel (0) target = $region53
  $region52: #{_lambda_.3} parent=0 // pred_region
    _
  $region53: #{_lambda_.3} parent=0 // pred_fallthru
    _
  // Predicated region
  $region54: #{_lambda_.3} parent=0 // pred_check
    _
  $region55: #{_lambda_.3} parent=0 // pred_check_branch
    %1131 = sbr.rel (0) target = $region57
  $region56: #{_lambda_.3} parent=0 // pred_region
    _
  $region57: #{_lambda_.3} parent=0 // pred_fallthru
    _

</llo_original>
